<compile_context>
chip_gen: v6e
topology: v6e:2x2x1
jax: 0.10.0
libtpu: 0.0.40
codegen_flags: <defaults>
</compile_context>

<pallas_src>
import functools

import jax
import jax.numpy as jnp
from jax.experimental import pallas as pl
from jax.experimental.pallas import tpu as pltpu

NUM_CLASSES = 2
OVERLAP_THRESH = 0.35
NEG_POS_RATIO = 7
VARIANCE = (0.1, 0.2)

_OUT_LANES = 128    # lane-dense per-image partial-result row
_RANK_STRIP = 128   # sublane strip size for hard-negative-mining rank


# ----------------------------------------------------------------------------
# Fused kernel: one batch element per grid step.
# ----------------------------------------------------------------------------
def _multibox_fused_kernel(truths_ref, vals_ref, priors_ref,
                           loc_p_ref, conf_p_ref, landm_p_ref, out_ref,
                           *, num_truths, num_priors, threshold,
                           negpos_ratio, variances):
    NT, P = num_truths, num_priors
    v0, v1 = variances

    t = truths_ref[0]          # (NT, 4)  corner-form GT boxes (rows, for IoU)
    vals = vals_ref[0]         # (16, NT) [lm0..lm9, x1,y1,x2,y2, label, pad]
    pri = priors_ref[...]      # (4, P)   center-form priors [cx, cy, w, h]
    loc_p = loc_p_ref[0]       # (4, P)
    conf_p = conf_p_ref[0]     # (C, P)
    landm_p = landm_p_ref[0]   # (10, P)

    p_cx = pri[0:1, :]
    p_cy = pri[1:2, :]
    p_w = pri[2:3, :]
    p_h = pri[3:4, :]

    # point-form priors
    px1 = p_cx - p_w * 0.5
    py1 = p_cy - p_h * 0.5
    px2 = p_cx + p_w * 0.5
    py2 = p_cy + p_h * 0.5

    tx1 = t[:, 0:1]
    ty1 = t[:, 1:2]
    tx2 = t[:, 2:3]
    ty2 = t[:, 3:4]

    # jaccard overlap matrix (NT, P)
    iw = jnp.maximum(jnp.minimum(tx2, px2) - jnp.maximum(tx1, px1), 0.0)
    ih = jnp.maximum(jnp.minimum(ty2, py2) - jnp.maximum(ty1, py1), 0.0)
    inter = iw * ih
    area_t = (tx2 - tx1) * (ty2 - ty1)            # (NT, 1)
    area_p = (px2 - px1) * (py2 - py1)            # (1, P)
    overlaps = inter / (area_t + area_p - inter)  # (NT, P)

    truth_ids = jax.lax.broadcasted_iota(jnp.int32, (NT, P), 0)
    prior_ids = jax.lax.broadcasted_iota(jnp.int32, (NT, P), 1)
    prior_iota = jax.lax.broadcasted_iota(jnp.int32, (1, P), 1)

    # best prior per GT / best GT per prior (first index on ties)
    bpo = jnp.max(overlaps, axis=1, keepdims=True)                  # (NT, 1)
    bpi = jnp.min(jnp.where(overlaps == bpo, prior_ids, P),
                  axis=1, keepdims=True)                            # (NT, 1)
    bto = jnp.max(overlaps, axis=0, keepdims=True)                  # (1, P)
    bti = jnp.min(jnp.where(overlaps == bto, truth_ids, NT),
                  axis=0, keepdims=True)                            # (1, P)

    # index_fill forcing: single NT loop, mask shared between bto and bti
    for j in range(NT):
        m = prior_iota == jnp.broadcast_to(bpi[j:j + 1, 0:1], (1, P))
        bto = jnp.where(m, 2.0, bto)
        bti = jnp.where(m, j, bti)

    # gather of [landms(10), box(4), label(1)] columns through ONE MXU matmul:
    #   g[r, p] = vals[r, best_truth_idx[p]]
    onehot = (truth_ids == jnp.broadcast_to(bti, (NT, P))).astype(jnp.float32)
    g = jnp.dot(vals, onehot, preferred_element_type=jnp.float32)   # (16, P)

    lm_g = g[0:10]                                                  # (10, P)
    mx1 = g[10:11]
    my1 = g[11:12]
    mx2 = g[12:13]
    my2 = g[13:14]
    conf = jnp.where(bto < threshold, 0.0, g[14:15])                # (1, P)

    # encode(matched, priors, variances)
    g_cx = ((mx1 + mx2) * 0.5 - p_cx) / (v0 * p_w)
    g_cy = ((my1 + my2) * 0.5 - p_cy) / (v0 * p_h)
    g_w = jnp.log((mx2 - mx1) / p_w) / v1
    g_h = jnp.log((my2 - my1) / p_h) / v1
    loc_t = jnp.concatenate([g_cx, g_cy, g_w, g_h], axis=0)         # (4, P)

    # encode_landm(matched_landm, priors, variances)  (rows are x0,y0,...,x4,y4)
    centers = jnp.concatenate([p_cx, p_cy] * 5, axis=0)             # (10, P)
    scales = jnp.concatenate([v0 * p_w, v0 * p_h] * 5, axis=0)      # (10, P)
    landm_t = (lm_g - centers) / scales                             # (10, P)

    pos1 = conf > 0.0            # (1, P)
    pos = conf != 0.0            # (1, P)

    def smooth_l1(d):
        ad = jnp.abs(d)
        return jnp.where(ad < 1.0, 0.5 * d * d, ad - 0.5)

    # where-select (not multiply) so inf/NaN from degenerate/padded GT boxes on
    # non-positive priors never reach the sums (the PyTorch reference only ever
    # indexes positives).
    loss_landm_b = jnp.sum(jnp.where(pos1, smooth_l1(landm_p - landm_t), 0.0))
    loss_l_b = jnp.sum(jnp.where(pos, smooth_l1(loc_p - loc_t), 0.0))

    # per-prior softmax cross-entropy against conf_t (positives forced to 1)
    mx = jnp.max(conf_p, axis=0, keepdims=True)                     # (1, P)
    lse = jnp.log(jnp.sum(jnp.exp(conf_p - mx), axis=0, keepdims=True)) + mx
    conf_tw = jnp.where(pos, 1.0, conf)
    # after conf_t[pos] = 1 targets are binary (0 or 1) for any num_classes,
    # so the per-class gather loop collapses to one select.
    gathered = jnp.where(conf_tw == 1.0, conf_p[1:2], conf_p[0:1])
    ce = lse - gathered                                             # (1, P)

    loss_c0 = jnp.where(pos, 0.0, ce)                               # mined loss
    num_pos_b = jnp.sum(pos.astype(jnp.float32))
    num_pos1_b = jnp.sum(pos1.astype(jnp.float32))
    num_neg = jnp.minimum(negpos_ratio * num_pos_b, jnp.float32(P - 1))

    # hard negative mining: rank of each prior in a stable descending sort of
    # loss_c0, computed in (TS, P) comparison strips (memory O(TS*P), no
    # (P,P) matrices, no full transpose).
    TS = min(_RANK_STRIP, P)
    num_strips = P // TS
    row_local = jax.lax.broadcasted_iota(jnp.int32, (TS, P), 0)
    col_ids = jax.lax.broadcasted_iota(jnp.int32, (TS, P), 1)
    v_all = jnp.broadcast_to(loss_c0, (TS, P))      # hoisted out of the loop
    ce_all = jnp.broadcast_to(ce, (TS, P))
    posf_all = jnp.broadcast_to(pos.astype(jnp.float32), (TS, P))

    def strip_body(s, acc):
        row_ids = row_local + s * TS                # global prior index i
        sel = col_ids == row_ids                    # one lane per row
        v_mine = jnp.sum(jnp.where(sel, v_all, 0.0), axis=1, keepdims=True)
        ce_mine = jnp.sum(jnp.where(sel, ce_all, 0.0), axis=1, keepdims=True)
        pos_mine = jnp.sum(jnp.where(sel, posf_all, 0.0),
                           axis=1, keepdims=True) > 0.0
        before = jnp.logical_or(
            v_all > v_mine,
            jnp.logical_and(v_all == v_mine, col_ids < row_ids))
        rank = jnp.sum(before.astype(jnp.float32), axis=1, keepdims=True)
        take = jnp.logical_or(pos_mine, rank < num_neg)
        return acc + jnp.sum(jnp.where(take, ce_mine, 0.0))

    if num_strips <= 8:
        loss_c_b = jnp.float32(0.0)
        for s in range(num_strips):
            loss_c_b = strip_body(s, loss_c_b)
    else:
        loss_c_b = jax.lax.fori_loop(0, num_strips, strip_body,
                                     jnp.float32(0.0))

    # lane-dense per-image partial results:
    # [loss_l, loss_c, loss_landm, num_pos, num_pos_landm, 0...]
    lane = jax.lax.broadcasted_iota(jnp.int32, (1, _OUT_LANES), 1)
    row = (jnp.where(lane == 0, loss_l_b, 0.0)
           + jnp.where(lane == 1, loss_c_b, 0.0)
           + jnp.where(lane == 2, loss_landm_b, 0.0)
           + jnp.where(lane == 3, num_pos_b, 0.0)
           + jnp.where(lane == 4, num_pos1_b, 0.0))
    out_ref[0] = row


# ----------------------------------------------------------------------------
# Wrapper
# ----------------------------------------------------------------------------
def multibox_loss(loc_data, conf_data, landm_data, priors, targets,
                  *, num_classes=NUM_CLASSES, negpos_ratio=NEG_POS_RATIO,
                  threshold=OVERLAP_THRESH, variances=VARIANCE):
    """PyTorch layouts: loc (B,P,4), conf (B,P,C), landm (B,P,10),
    priors (P,4) center-form, targets (B,NT,15) = [box(4), landms(10), label]."""
    B, P, _ = loc_data.shape
    NT = targets.shape[1]
    assert P % 128 == 0, "num_priors must be a multiple of 128 (TPU lanes)"

    # channel-major predictions (B, C, P): prior axis on TPU lanes.
    # TODO(synk): have the detection head emit channel-major directly to avoid
    # this extra HBM transpose pass (matters most on v5e).
    loc_p = jnp.transpose(loc_data, (0, 2, 1)).astype(jnp.float32)
    conf_p = jnp.transpose(conf_data, (0, 2, 1)).astype(jnp.float32)
    landm_p = jnp.transpose(landm_data, (0, 2, 1)).astype(jnp.float32)
    priors_t = jnp.transpose(priors).astype(jnp.float32)             # (4, P)

    truths = targets[:, :, :4].astype(jnp.float32)                   # (B,NT,4)
    # column-major GT table for the in-kernel MXU gather:
    # rows = [lm0..lm9, x1, y1, x2, y2, label, pad]  -> (B, 16, NT)
    vals = jnp.concatenate(
        [targets[:, :, 4:14], targets[:, :, :4], targets[:, :, 14:15],
         jnp.zeros((B, NT, 1), targets.dtype)], axis=-1)
    vals = jnp.transpose(vals, (0, 2, 1)).astype(jnp.float32)

    kernel = functools.partial(
        _multibox_fused_kernel, num_truths=NT, num_priors=P,
        threshold=threshold, negpos_ratio=negpos_ratio, variances=variances)

    partials = pl.pallas_call(
        kernel,
        out_shape=jax.ShapeDtypeStruct((B, 1, _OUT_LANES), jnp.float32),
        grid=(B,),
        in_specs=[pl.BlockSpec((1, NT, 4), lambda b: (b, 0, 0)),
                  pl.BlockSpec((1, 16, NT), lambda b: (b, 0, 0)),
                  pl.BlockSpec((4, P), lambda b: (0, 0)),
                  pl.BlockSpec((1, 4, P), lambda b: (b, 0, 0)),
                  pl.BlockSpec((1, num_classes, P), lambda b: (b, 0, 0)),
                  pl.BlockSpec((1, 10, P), lambda b: (b, 0, 0))],
        out_specs=pl.BlockSpec((1, 1, _OUT_LANES), lambda b: (b, 0, 0)),
        compiler_params=pltpu.CompilerParams(
            dimension_semantics=("parallel",)),
    )(truths, vals, priors_t, loc_p, conf_p, landm_p)

    part = partials[:, 0, :]                                         # (B, 128)
    n = jnp.maximum(jnp.sum(part[:, 3]), 1.0)
    n1 = jnp.maximum(jnp.sum(part[:, 4]), 1.0)
    loss_l = jnp.sum(part[:, 0]) / n
    loss_c = jnp.sum(part[:, 1]) / n
    loss_landm = jnp.sum(part[:, 2]) / n1
    return loss_l, loss_c, loss_landm


# ----------------------------------------------------------------------------
if __name__ == "__main__":
    key = jax.random.PRNGKey(0)
    B, P, NT, C = 2, 128, 8, NUM_CLASSES
    k1, k2, k3, k4, k5, k6, k7, k8 = jax.random.split(key, 8)

    # predictions (as produced by the detection head)
    loc_data = jax.random.normal(k1, (B, P, 4), jnp.float32)
    conf_data = jax.random.normal(k2, (B, P, C), jnp.float32)
    landm_data = jax.random.normal(k3, (B, P, 10), jnp.float32)

    # priors: center-form (cx, cy, w, h) in [0, 1]
    p_cxcy = jax.random.uniform(k4, (P, 2), minval=0.1, maxval=0.9)
    p_wh = jax.random.uniform(k5, (P, 2), minval=0.05, maxval=0.3)
    priors = jnp.concatenate([p_cxcy, p_wh], axis=1).astype(jnp.float32)

    # targets: (B, NT, 15) = [x1, y1, x2, y2, 10 landmark coords, label]
    t_cxcy = jax.random.uniform(k6, (B, NT, 2), minval=0.25, maxval=0.75)
    t_wh = jax.random.uniform(k7, (B, NT, 2), minval=0.1, maxval=0.4)
    boxes = jnp.concatenate([t_cxcy - t_wh / 2, t_cxcy + t_wh / 2], axis=-1)
    lmk = jax.random.uniform(k8, (B, NT, 10), minval=0.0, maxval=1.0)
    labels = jnp.ones((B, NT, 1), jnp.float32)
    targets = jnp.concatenate([boxes, lmk, labels], axis=-1).astype(jnp.float32)

    loss_l, loss_c, loss_landm = multibox_loss(
        loc_data, conf_data, landm_data, priors, targets)
    (loss_l, loss_c, loss_landm) = jax.block_until_ready(
        (loss_l, loss_c, loss_landm))

    assert bool(jnp.isfinite(loss_l)) and bool(jnp.isfinite(loss_c)) \
        and bool(jnp.isfinite(loss_landm))
    print("KERNEL_OK")
</pallas_src>

<mosaic_0001>
module attributes {stable_mosaic.version = 11 : i64} {
  func.func @_multibox_fused_kernel(%arg0: i32, %arg1: memref<1x8x4xf32, #tpu.memory_space<vmem>>, %arg2: memref<1x16x8xf32, #tpu.memory_space<vmem>>, %arg3: memref<4x128xf32, #tpu.memory_space<vmem>>, %arg4: memref<1x4x128xf32, #tpu.memory_space<vmem>>, %arg5: memref<1x2x128xf32, #tpu.memory_space<vmem>>, %arg6: memref<1x10x128xf32, #tpu.memory_space<vmem>>, %arg7: memref<1x1x128xf32, #tpu.memory_space<vmem>>) attributes {dimension_semantics = [#tpu.dimension_semantics<parallel>], iteration_bounds = array<i64: 2>, scalar_prefetch = 0 : i64, scratch_operands = 0 : i64, tpu.core_type = #tpu.core_type<tc>, window_params = [{transform_indices = @transform_0, window_bounds = array<i64: 1, 8, 4>}, {transform_indices = @transform_1, window_bounds = array<i64: 1, 16, 8>}, {pipeline_mode = #tpu.pipeline_mode<synchronous>, transform_indices = @transform_2, window_bounds = array<i64: 4, 128>}, {transform_indices = @transform_3, window_bounds = array<i64: 1, 4, 128>}, {transform_indices = @transform_4, window_bounds = array<i64: 1, 2, 128>}, {transform_indices = @transform_5, window_bounds = array<i64: 1, 10, 128>}, {transform_indices = @transform_6, window_bounds = array<i64: 1, 1, 128>}]} {
    %c0 = arith.constant 0 : index
    %c0_0 = arith.constant 0 : index
    %c0_1 = arith.constant 0 : index
    %0 = vector.load %arg1[%c0, %c0_0, %c0_1] : memref<1x8x4xf32, #tpu.memory_space<vmem>>, vector<1x8x4xf32>
    %1 = vector.shape_cast %0 : vector<1x8x4xf32> to vector<8x4xf32>
    %c0_2 = arith.constant 0 : index
    %c0_3 = arith.constant 0 : index
    %c0_4 = arith.constant 0 : index
    %2 = vector.load %arg2[%c0_2, %c0_3, %c0_4] : memref<1x16x8xf32, #tpu.memory_space<vmem>>, vector<1x16x8xf32>
    %3 = vector.shape_cast %2 : vector<1x16x8xf32> to vector<16x8xf32>
    %c0_5 = arith.constant 0 : index
    %c0_6 = arith.constant 0 : index
    %4 = vector.load %arg3[%c0_5, %c0_6] : memref<4x128xf32, #tpu.memory_space<vmem>>, vector<4x128xf32>
    %c0_7 = arith.constant 0 : index
    %c0_8 = arith.constant 0 : index
    %c0_9 = arith.constant 0 : index
    %5 = vector.load %arg4[%c0_7, %c0_8, %c0_9] : memref<1x4x128xf32, #tpu.memory_space<vmem>>, vector<1x4x128xf32>
    %6 = vector.shape_cast %5 : vector<1x4x128xf32> to vector<4x128xf32>
    %c0_10 = arith.constant 0 : index
    %c0_11 = arith.constant 0 : index
    %c0_12 = arith.constant 0 : index
    %7 = vector.load %arg5[%c0_10, %c0_11, %c0_12] : memref<1x2x128xf32, #tpu.memory_space<vmem>>, vector<1x2x128xf32>
    %8 = vector.shape_cast %7 : vector<1x2x128xf32> to vector<2x128xf32>
    %c0_13 = arith.constant 0 : index
    %c0_14 = arith.constant 0 : index
    %c0_15 = arith.constant 0 : index
    %9 = vector.load %arg6[%c0_13, %c0_14, %c0_15] : memref<1x10x128xf32, #tpu.memory_space<vmem>>, vector<1x10x128xf32>
    %10 = vector.shape_cast %9 : vector<1x10x128xf32> to vector<10x128xf32>
    %11 = vector.extract_strided_slice %4 {offsets = [0, 0], sizes = [1, 128], strides = [1, 1]} : vector<4x128xf32> to vector<1x128xf32>
    %12 = vector.extract_strided_slice %4 {offsets = [1, 0], sizes = [1, 128], strides = [1, 1]} : vector<4x128xf32> to vector<1x128xf32>
    %13 = vector.extract_strided_slice %4 {offsets = [2, 0], sizes = [1, 128], strides = [1, 1]} : vector<4x128xf32> to vector<1x128xf32>
    %14 = vector.extract_strided_slice %4 {offsets = [3, 0], sizes = [1, 128], strides = [1, 1]} : vector<4x128xf32> to vector<1x128xf32>
    %cst = arith.constant 5.000000e-01 : f32
    %15 = vector.broadcast %cst : f32 to vector<1x128xf32>
    %16 = arith.mulf %13, %15 : vector<1x128xf32>
    %17 = arith.subf %11, %16 : vector<1x128xf32>
    %cst_16 = arith.constant 5.000000e-01 : f32
    %18 = vector.broadcast %cst_16 : f32 to vector<1x128xf32>
    %19 = arith.mulf %14, %18 : vector<1x128xf32>
    %20 = arith.subf %12, %19 : vector<1x128xf32>
    %cst_17 = arith.constant 5.000000e-01 : f32
    %21 = vector.broadcast %cst_17 : f32 to vector<1x128xf32>
    %22 = arith.mulf %13, %21 : vector<1x128xf32>
    %23 = arith.addf %11, %22 : vector<1x128xf32>
    %cst_18 = arith.constant 5.000000e-01 : f32
    %24 = vector.broadcast %cst_18 : f32 to vector<1x128xf32>
    %25 = arith.mulf %14, %24 : vector<1x128xf32>
    %26 = arith.addf %12, %25 : vector<1x128xf32>
    %27 = vector.extract_strided_slice %1 {offsets = [0, 0], sizes = [8, 1], strides = [1, 1]} : vector<8x4xf32> to vector<8x1xf32>
    %28 = vector.extract_strided_slice %1 {offsets = [0, 1], sizes = [8, 1], strides = [1, 1]} : vector<8x4xf32> to vector<8x1xf32>
    %29 = vector.extract_strided_slice %1 {offsets = [0, 2], sizes = [8, 1], strides = [1, 1]} : vector<8x4xf32> to vector<8x1xf32>
    %30 = vector.extract_strided_slice %1 {offsets = [0, 3], sizes = [8, 1], strides = [1, 1]} : vector<8x4xf32> to vector<8x1xf32>
    %31 = vector.broadcast %29 : vector<8x1xf32> to vector<8x128xf32>
    %32 = vector.broadcast %23 : vector<1x128xf32> to vector<8x128xf32>
    %33 = arith.minimumf %31, %32 : vector<8x128xf32>
    %34 = vector.broadcast %27 : vector<8x1xf32> to vector<8x128xf32>
    %35 = vector.broadcast %17 : vector<1x128xf32> to vector<8x128xf32>
    %36 = arith.maximumf %34, %35 : vector<8x128xf32>
    %37 = arith.subf %33, %36 : vector<8x128xf32>
    %cst_19 = arith.constant 0.000000e+00 : f32
    %38 = vector.broadcast %cst_19 : f32 to vector<8x128xf32>
    %39 = arith.maximumf %37, %38 : vector<8x128xf32>
    %40 = vector.broadcast %30 : vector<8x1xf32> to vector<8x128xf32>
    %41 = vector.broadcast %26 : vector<1x128xf32> to vector<8x128xf32>
    %42 = arith.minimumf %40, %41 : vector<8x128xf32>
    %43 = vector.broadcast %28 : vector<8x1xf32> to vector<8x128xf32>
    %44 = vector.broadcast %20 : vector<1x128xf32> to vector<8x128xf32>
    %45 = arith.maximumf %43, %44 : vector<8x128xf32>
    %46 = arith.subf %42, %45 : vector<8x128xf32>
    %cst_20 = arith.constant 0.000000e+00 : f32
    %47 = vector.broadcast %cst_20 : f32 to vector<8x128xf32>
    %48 = arith.maximumf %46, %47 : vector<8x128xf32>
    %49 = arith.mulf %39, %48 : vector<8x128xf32>
    %50 = arith.subf %29, %27 : vector<8x1xf32>
    %51 = arith.subf %30, %28 : vector<8x1xf32>
    %52 = arith.mulf %50, %51 : vector<8x1xf32>
    %53 = arith.subf %23, %17 : vector<1x128xf32>
    %54 = arith.subf %26, %20 : vector<1x128xf32>
    %55 = arith.mulf %53, %54 : vector<1x128xf32>
    %56 = vector.broadcast %52 : vector<8x1xf32> to vector<8x128xf32>
    %57 = vector.broadcast %55 : vector<1x128xf32> to vector<8x128xf32>
    %58 = arith.addf %56, %57 : vector<8x128xf32>
    %59 = arith.subf %58, %49 : vector<8x128xf32>
    %60 = arith.divf %49, %59 : vector<8x128xf32>
    %61 = tpu.iota {dimensions = array<i32: 0>} : vector<8x128xi32>
    %62 = tpu.iota {dimensions = array<i32: 1>} : vector<8x128xi32>
    %63 = tpu.iota {dimensions = array<i32: 1>} : vector<1x128xi32>
    %cst_21 = arith.constant dense<0xFF800000> : vector<8xf32>
    %64 = vector.multi_reduction <maximumf>, %60, %cst_21 [1] : vector<8x128xf32> to vector<8xf32>
    %65 = vector.shape_cast %64 : vector<8xf32> to vector<8x1xf32>
    %66 = vector.broadcast %65 : vector<8x1xf32> to vector<8x128xf32>
    %67 = arith.cmpf oeq, %60, %66 : vector<8x128xf32>
    %c128_i32 = arith.constant 128 : i32
    %68 = vector.broadcast %c128_i32 : i32 to vector<8x128xi32>
    %69 = arith.select %67, %62, %68 : vector<8x128xi1>, vector<8x128xi32>
    %cst_22 = arith.constant dense<2147483647> : vector<8xi32>
    %70 = vector.multi_reduction <minsi>, %69, %cst_22 [1] : vector<8x128xi32> to vector<8xi32>
    %71 = vector.shape_cast %70 : vector<8xi32> to vector<8x1xi32>
    %cst_23 = arith.constant dense<0xFF800000> : vector<128xf32>
    %72 = vector.multi_reduction <maximumf>, %60, %cst_23 [0] : vector<8x128xf32> to vector<128xf32>
    %73 = vector.shape_cast %72 : vector<128xf32> to vector<1x128xf32>
    %74 = vector.broadcast %73 : vector<1x128xf32> to vector<8x128xf32>
    %75 = arith.cmpf oeq, %60, %74 : vector<8x128xf32>
    %c8_i32 = arith.constant 8 : i32
    %76 = vector.broadcast %c8_i32 : i32 to vector<8x128xi32>
    %77 = arith.select %75, %61, %76 : vector<8x128xi1>, vector<8x128xi32>
    %cst_24 = arith.constant dense<2147483647> : vector<128xi32>
    %78 = vector.multi_reduction <minsi>, %77, %cst_24 [0] : vector<8x128xi32> to vector<128xi32>
    %79 = vector.shape_cast %78 : vector<128xi32> to vector<1x128xi32>
    %80 = vector.extract_strided_slice %71 {offsets = [0, 0], sizes = [1, 1], strides = [1, 1]} : vector<8x1xi32> to vector<1x1xi32>
    %81 = vector.shape_cast %80 : vector<1x1xi32> to vector<1x1xi32>
    %82 = vector.broadcast %81 : vector<1x1xi32> to vector<1x128xi32>
    %83 = arith.cmpi eq, %63, %82 : vector<1x128xi32>
    %cst_25 = arith.constant 2.000000e+00 : f32
    %84 = vector.broadcast %cst_25 : f32 to vector<1x128xf32>
    %85 = arith.select %83, %84, %73 : vector<1x128xi1>, vector<1x128xf32>
    %c0_i32 = arith.constant 0 : i32
    %86 = vector.broadcast %c0_i32 : i32 to vector<1x128xi32>
    %87 = arith.select %83, %86, %79 : vector<1x128xi1>, vector<1x128xi32>
    %88 = vector.extract_strided_slice %71 {offsets = [1, 0], sizes = [1, 1], strides = [1, 1]} : vector<8x1xi32> to vector<1x1xi32>
    %89 = vector.shape_cast %88 : vector<1x1xi32> to vector<1x1xi32>
    %90 = vector.broadcast %89 : vector<1x1xi32> to vector<1x128xi32>
    %91 = arith.cmpi eq, %63, %90 : vector<1x128xi32>
    %cst_26 = arith.constant 2.000000e+00 : f32
    %92 = vector.broadcast %cst_26 : f32 to vector<1x128xf32>
    %93 = arith.select %91, %92, %85 : vector<1x128xi1>, vector<1x128xf32>
    %c1_i32 = arith.constant 1 : i32
    %94 = vector.broadcast %c1_i32 : i32 to vector<1x128xi32>
    %95 = arith.select %91, %94, %87 : vector<1x128xi1>, vector<1x128xi32>
    %96 = vector.extract_strided_slice %71 {offsets = [2, 0], sizes = [1, 1], strides = [1, 1]} : vector<8x1xi32> to vector<1x1xi32>
    %97 = vector.shape_cast %96 : vector<1x1xi32> to vector<1x1xi32>
    %98 = vector.broadcast %97 : vector<1x1xi32> to vector<1x128xi32>
    %99 = arith.cmpi eq, %63, %98 : vector<1x128xi32>
    %cst_27 = arith.constant 2.000000e+00 : f32
    %100 = vector.broadcast %cst_27 : f32 to vector<1x128xf32>
    %101 = arith.select %99, %100, %93 : vector<1x128xi1>, vector<1x128xf32>
    %c2_i32 = arith.constant 2 : i32
    %102 = vector.broadcast %c2_i32 : i32 to vector<1x128xi32>
    %103 = arith.select %99, %102, %95 : vector<1x128xi1>, vector<1x128xi32>
    %104 = vector.extract_strided_slice %71 {offsets = [3, 0], sizes = [1, 1], strides = [1, 1]} : vector<8x1xi32> to vector<1x1xi32>
    %105 = vector.shape_cast %104 : vector<1x1xi32> to vector<1x1xi32>
    %106 = vector.broadcast %105 : vector<1x1xi32> to vector<1x128xi32>
    %107 = arith.cmpi eq, %63, %106 : vector<1x128xi32>
    %cst_28 = arith.constant 2.000000e+00 : f32
    %108 = vector.broadcast %cst_28 : f32 to vector<1x128xf32>
    %109 = arith.select %107, %108, %101 : vector<1x128xi1>, vector<1x128xf32>
    %c3_i32 = arith.constant 3 : i32
    %110 = vector.broadcast %c3_i32 : i32 to vector<1x128xi32>
    %111 = arith.select %107, %110, %103 : vector<1x128xi1>, vector<1x128xi32>
    %112 = vector.extract_strided_slice %71 {offsets = [4, 0], sizes = [1, 1], strides = [1, 1]} : vector<8x1xi32> to vector<1x1xi32>
    %113 = vector.shape_cast %112 : vector<1x1xi32> to vector<1x1xi32>
    %114 = vector.broadcast %113 : vector<1x1xi32> to vector<1x128xi32>
    %115 = arith.cmpi eq, %63, %114 : vector<1x128xi32>
    %cst_29 = arith.constant 2.000000e+00 : f32
    %116 = vector.broadcast %cst_29 : f32 to vector<1x128xf32>
    %117 = arith.select %115, %116, %109 : vector<1x128xi1>, vector<1x128xf32>
    %c4_i32 = arith.constant 4 : i32
    %118 = vector.broadcast %c4_i32 : i32 to vector<1x128xi32>
    %119 = arith.select %115, %118, %111 : vector<1x128xi1>, vector<1x128xi32>
    %120 = vector.extract_strided_slice %71 {offsets = [5, 0], sizes = [1, 1], strides = [1, 1]} : vector<8x1xi32> to vector<1x1xi32>
    %121 = vector.shape_cast %120 : vector<1x1xi32> to vector<1x1xi32>
    %122 = vector.broadcast %121 : vector<1x1xi32> to vector<1x128xi32>
    %123 = arith.cmpi eq, %63, %122 : vector<1x128xi32>
    %cst_30 = arith.constant 2.000000e+00 : f32
    %124 = vector.broadcast %cst_30 : f32 to vector<1x128xf32>
    %125 = arith.select %123, %124, %117 : vector<1x128xi1>, vector<1x128xf32>
    %c5_i32 = arith.constant 5 : i32
    %126 = vector.broadcast %c5_i32 : i32 to vector<1x128xi32>
    %127 = arith.select %123, %126, %119 : vector<1x128xi1>, vector<1x128xi32>
    %128 = vector.extract_strided_slice %71 {offsets = [6, 0], sizes = [1, 1], strides = [1, 1]} : vector<8x1xi32> to vector<1x1xi32>
    %129 = vector.shape_cast %128 : vector<1x1xi32> to vector<1x1xi32>
    %130 = vector.broadcast %129 : vector<1x1xi32> to vector<1x128xi32>
    %131 = arith.cmpi eq, %63, %130 : vector<1x128xi32>
    %cst_31 = arith.constant 2.000000e+00 : f32
    %132 = vector.broadcast %cst_31 : f32 to vector<1x128xf32>
    %133 = arith.select %131, %132, %125 : vector<1x128xi1>, vector<1x128xf32>
    %c6_i32 = arith.constant 6 : i32
    %134 = vector.broadcast %c6_i32 : i32 to vector<1x128xi32>
    %135 = arith.select %131, %134, %127 : vector<1x128xi1>, vector<1x128xi32>
    %136 = vector.extract_strided_slice %71 {offsets = [7, 0], sizes = [1, 1], strides = [1, 1]} : vector<8x1xi32> to vector<1x1xi32>
    %137 = vector.shape_cast %136 : vector<1x1xi32> to vector<1x1xi32>
    %138 = vector.broadcast %137 : vector<1x1xi32> to vector<1x128xi32>
    %139 = arith.cmpi eq, %63, %138 : vector<1x128xi32>
    %cst_32 = arith.constant 2.000000e+00 : f32
    %140 = vector.broadcast %cst_32 : f32 to vector<1x128xf32>
    %141 = arith.select %139, %140, %133 : vector<1x128xi1>, vector<1x128xf32>
    %c7_i32 = arith.constant 7 : i32
    %142 = vector.broadcast %c7_i32 : i32 to vector<1x128xi32>
    %143 = arith.select %139, %142, %135 : vector<1x128xi1>, vector<1x128xi32>
    %144 = vector.shape_cast %143 : vector<1x128xi32> to vector<1x128xi32>
    %145 = vector.broadcast %144 : vector<1x128xi32> to vector<8x128xi32>
    %146 = arith.cmpi eq, %61, %145 : vector<8x128xi32>
    %147 = arith.extui %146 : vector<8x128xi1> to vector<8x128xi32>
    %148 = arith.sitofp %147 : vector<8x128xi32> to vector<8x128xf32>
    %cst_33 = arith.constant dense<0.000000e+00> : vector<16x128xf32>
    %149 = tpu.matmul %3, %148, %cst_33 {dimension_numbers = #tpu.dot_dimension_numbers<[1], [0], [0], [1], [0, 0, 1, 1], [], []>} : vector<16x8xf32>, vector<8x128xf32>, vector<16x128xf32> -> vector<16x128xf32>
    %150 = vector.extract_strided_slice %149 {offsets = [0, 0], sizes = [10, 128], strides = [1, 1]} : vector<16x128xf32> to vector<10x128xf32>
    %151 = vector.extract_strided_slice %149 {offsets = [10, 0], sizes = [1, 128], strides = [1, 1]} : vector<16x128xf32> to vector<1x128xf32>
    %152 = vector.extract_strided_slice %149 {offsets = [11, 0], sizes = [1, 128], strides = [1, 1]} : vector<16x128xf32> to vector<1x128xf32>
    %153 = vector.extract_strided_slice %149 {offsets = [12, 0], sizes = [1, 128], strides = [1, 1]} : vector<16x128xf32> to vector<1x128xf32>
    %154 = vector.extract_strided_slice %149 {offsets = [13, 0], sizes = [1, 128], strides = [1, 1]} : vector<16x128xf32> to vector<1x128xf32>
    %cst_34 = arith.constant 3.500000e-01 : f32
    %155 = vector.broadcast %cst_34 : f32 to vector<1x128xf32>
    %156 = arith.cmpf olt, %141, %155 : vector<1x128xf32>
    %157 = vector.extract_strided_slice %149 {offsets = [14, 0], sizes = [1, 128], strides = [1, 1]} : vector<16x128xf32> to vector<1x128xf32>
    %cst_35 = arith.constant 0.000000e+00 : f32
    %158 = vector.broadcast %cst_35 : f32 to vector<1x128xf32>
    %159 = arith.select %156, %158, %157 : vector<1x128xi1>, vector<1x128xf32>
    %160 = arith.addf %151, %153 : vector<1x128xf32>
    %cst_36 = arith.constant 5.000000e-01 : f32
    %161 = vector.broadcast %cst_36 : f32 to vector<1x128xf32>
    %162 = arith.mulf %160, %161 : vector<1x128xf32>
    %163 = arith.subf %162, %11 : vector<1x128xf32>
    %cst_37 = arith.constant 1.000000e-01 : f32
    %164 = vector.broadcast %cst_37 : f32 to vector<1x128xf32>
    %165 = arith.mulf %164, %13 : vector<1x128xf32>
    %166 = arith.divf %163, %165 : vector<1x128xf32>
    %167 = arith.addf %152, %154 : vector<1x128xf32>
    %cst_38 = arith.constant 5.000000e-01 : f32
    %168 = vector.broadcast %cst_38 : f32 to vector<1x128xf32>
    %169 = arith.mulf %167, %168 : vector<1x128xf32>
    %170 = arith.subf %169, %12 : vector<1x128xf32>
    %cst_39 = arith.constant 1.000000e-01 : f32
    %171 = vector.broadcast %cst_39 : f32 to vector<1x128xf32>
    %172 = arith.mulf %171, %14 : vector<1x128xf32>
    %173 = arith.divf %170, %172 : vector<1x128xf32>
    %174 = arith.subf %153, %151 : vector<1x128xf32>
    %175 = arith.divf %174, %13 : vector<1x128xf32>
    %176 = math.log %175 : vector<1x128xf32>
    %cst_40 = arith.constant 2.000000e-01 : f32
    %177 = vector.broadcast %cst_40 : f32 to vector<1x128xf32>
    %178 = arith.divf %176, %177 : vector<1x128xf32>
    %179 = arith.subf %154, %152 : vector<1x128xf32>
    %180 = arith.divf %179, %14 : vector<1x128xf32>
    %181 = math.log %180 : vector<1x128xf32>
    %cst_41 = arith.constant 2.000000e-01 : f32
    %182 = vector.broadcast %cst_41 : f32 to vector<1x128xf32>
    %183 = arith.divf %181, %182 : vector<1x128xf32>
    %184 = tpu.concatenate %166, %173, %178, %183 in 0 : vector<1x128xf32>, vector<1x128xf32>, vector<1x128xf32>, vector<1x128xf32> -> vector<4x128xf32>
    %185 = tpu.concatenate %11, %12, %11, %12, %11, %12, %11, %12, %11, %12 in 0 : vector<1x128xf32>, vector<1x128xf32>, vector<1x128xf32>, vector<1x128xf32>, vector<1x128xf32>, vector<1x128xf32>, vector<1x128xf32>, vector<1x128xf32>, vector<1x128xf32>, vector<1x128xf32> -> vector<10x128xf32>
    %cst_42 = arith.constant 1.000000e-01 : f32
    %186 = vector.broadcast %cst_42 : f32 to vector<1x128xf32>
    %187 = arith.mulf %186, %13 : vector<1x128xf32>
    %cst_43 = arith.constant 1.000000e-01 : f32
    %188 = vector.broadcast %cst_43 : f32 to vector<1x128xf32>
    %189 = arith.mulf %188, %14 : vector<1x128xf32>
    %190 = tpu.concatenate %187, %189, %187, %189, %187, %189, %187, %189, %187, %189 in 0 : vector<1x128xf32>, vector<1x128xf32>, vector<1x128xf32>, vector<1x128xf32>, vector<1x128xf32>, vector<1x128xf32>, vector<1x128xf32>, vector<1x128xf32>, vector<1x128xf32>, vector<1x128xf32> -> vector<10x128xf32>
    %191 = arith.subf %150, %185 : vector<10x128xf32>
    %192 = arith.divf %191, %190 : vector<10x128xf32>
    %cst_44 = arith.constant 0.000000e+00 : f32
    %193 = vector.broadcast %cst_44 : f32 to vector<1x128xf32>
    %194 = arith.cmpf ogt, %159, %193 : vector<1x128xf32>
    %cst_45 = arith.constant 0.000000e+00 : f32
    %195 = vector.broadcast %cst_45 : f32 to vector<1x128xf32>
    %196 = arith.cmpf one, %159, %195 : vector<1x128xf32>
    %197 = arith.subf %10, %192 : vector<10x128xf32>
    %198 = math.absf %197 : vector<10x128xf32>
    %cst_46 = arith.constant 1.000000e+00 : f32
    %199 = vector.broadcast %cst_46 : f32 to vector<10x128xf32>
    %200 = arith.cmpf olt, %198, %199 : vector<10x128xf32>
    %cst_47 = arith.constant 5.000000e-01 : f32
    %201 = vector.broadcast %cst_47 : f32 to vector<10x128xf32>
    %202 = arith.mulf %201, %197 : vector<10x128xf32>
    %203 = arith.mulf %202, %197 : vector<10x128xf32>
    %cst_48 = arith.constant 5.000000e-01 : f32
    %204 = vector.broadcast %cst_48 : f32 to vector<10x128xf32>
    %205 = arith.subf %198, %204 : vector<10x128xf32>
    %206 = arith.select %200, %203, %205 : vector<10x128xi1>, vector<10x128xf32>
    %cst_49 = arith.constant 0.000000e+00 : f32
    %207 = vector.shape_cast %194 : vector<1x128xi1> to vector<1x128xi1>
    %208 = vector.broadcast %207 : vector<1x128xi1> to vector<10x128xi1>
    %209 = vector.broadcast %cst_49 : f32 to vector<10x128xf32>
    %210 = arith.select %208, %206, %209 : vector<10x128xi1>, vector<10x128xf32>
    %211 = vector.shape_cast %210 : vector<10x128xf32> to vector<1x10x128xf32>
    %cst_50 = arith.constant dense<0.000000e+00> : vector<1xf32>
    %212 = vector.multi_reduction <add>, %211, %cst_50 [1, 2] : vector<1x10x128xf32> to vector<1xf32>
    %213 = vector.shape_cast %212 : vector<1xf32> to vector<1x1x1xf32>
    %214 = vector.extract %213[0, 0, 0] : f32 from vector<1x1x1xf32>
    %215 = arith.subf %6, %184 : vector<4x128xf32>
    %216 = math.absf %215 : vector<4x128xf32>
    %cst_51 = arith.constant 1.000000e+00 : f32
    %217 = vector.broadcast %cst_51 : f32 to vector<4x128xf32>
    %218 = arith.cmpf olt, %216, %217 : vector<4x128xf32>
    %cst_52 = arith.constant 5.000000e-01 : f32
    %219 = vector.broadcast %cst_52 : f32 to vector<4x128xf32>
    %220 = arith.mulf %219, %215 : vector<4x128xf32>
    %221 = arith.mulf %220, %215 : vector<4x128xf32>
    %cst_53 = arith.constant 5.000000e-01 : f32
    %222 = vector.broadcast %cst_53 : f32 to vector<4x128xf32>
    %223 = arith.subf %216, %222 : vector<4x128xf32>
    %224 = arith.select %218, %221, %223 : vector<4x128xi1>, vector<4x128xf32>
    %cst_54 = arith.constant 0.000000e+00 : f32
    %225 = vector.shape_cast %196 : vector<1x128xi1> to vector<1x128xi1>
    %226 = vector.broadcast %225 : vector<1x128xi1> to vector<4x128xi1>
    %227 = vector.broadcast %cst_54 : f32 to vector<4x128xf32>
    %228 = arith.select %226, %224, %227 : vector<4x128xi1>, vector<4x128xf32>
    %229 = vector.shape_cast %228 : vector<4x128xf32> to vector<1x4x128xf32>
    %cst_55 = arith.constant dense<0.000000e+00> : vector<1xf32>
    %230 = vector.multi_reduction <add>, %229, %cst_55 [1, 2] : vector<1x4x128xf32> to vector<1xf32>
    %231 = vector.shape_cast %230 : vector<1xf32> to vector<1x1x1xf32>
    %232 = vector.extract %231[0, 0, 0] : f32 from vector<1x1x1xf32>
    %cst_56 = arith.constant dense<0xFF800000> : vector<128xf32>
    %233 = vector.multi_reduction <maximumf>, %8, %cst_56 [0] : vector<2x128xf32> to vector<128xf32>
    %234 = vector.shape_cast %233 : vector<128xf32> to vector<1x128xf32>
    %235 = vector.broadcast %234 : vector<1x128xf32> to vector<2x128xf32>
    %236 = arith.subf %8, %235 : vector<2x128xf32>
    %237 = math.exp %236 : vector<2x128xf32>
    %cst_57 = arith.constant dense<0.000000e+00> : vector<128xf32>
    %238 = vector.multi_reduction <add>, %237, %cst_57 [0] : vector<2x128xf32> to vector<128xf32>
    %239 = vector.shape_cast %238 : vector<128xf32> to vector<1x128xf32>
    %240 = math.log %239 : vector<1x128xf32>
    %241 = arith.addf %240, %234 : vector<1x128xf32>
    %cst_58 = arith.constant 1.000000e+00 : f32
    %242 = vector.broadcast %cst_58 : f32 to vector<1x128xf32>
    %243 = arith.select %196, %242, %159 : vector<1x128xi1>, vector<1x128xf32>
    %cst_59 = arith.constant 1.000000e+00 : f32
    %244 = vector.broadcast %cst_59 : f32 to vector<1x128xf32>
    %245 = arith.cmpf oeq, %243, %244 : vector<1x128xf32>
    %246 = vector.extract_strided_slice %8 {offsets = [1, 0], sizes = [1, 128], strides = [1, 1]} : vector<2x128xf32> to vector<1x128xf32>
    %247 = vector.extract_strided_slice %8 {offsets = [0, 0], sizes = [1, 128], strides = [1, 1]} : vector<2x128xf32> to vector<1x128xf32>
    %248 = arith.select %245, %246, %247 : vector<1x128xi1>, vector<1x128xf32>
    %249 = arith.subf %241, %248 : vector<1x128xf32>
    %cst_60 = arith.constant 0.000000e+00 : f32
    %250 = vector.broadcast %cst_60 : f32 to vector<1x128xf32>
    %251 = arith.select %196, %250, %249 : vector<1x128xi1>, vector<1x128xf32>
    %252 = arith.extui %196 : vector<1x128xi1> to vector<1x128xi32>
    %253 = arith.sitofp %252 : vector<1x128xi32> to vector<1x128xf32>
    %254 = vector.shape_cast %253 : vector<1x128xf32> to vector<1x1x128xf32>
    %cst_61 = arith.constant dense<0.000000e+00> : vector<1xf32>
    %255 = vector.multi_reduction <add>, %254, %cst_61 [1, 2] : vector<1x1x128xf32> to vector<1xf32>
    %256 = vector.shape_cast %255 : vector<1xf32> to vector<1x1x1xf32>
    %257 = vector.extract %256[0, 0, 0] : f32 from vector<1x1x1xf32>
    %258 = arith.extui %194 : vector<1x128xi1> to vector<1x128xi32>
    %259 = arith.sitofp %258 : vector<1x128xi32> to vector<1x128xf32>
    %260 = vector.shape_cast %259 : vector<1x128xf32> to vector<1x1x128xf32>
    %cst_62 = arith.constant dense<0.000000e+00> : vector<1xf32>
    %261 = vector.multi_reduction <add>, %260, %cst_62 [1, 2] : vector<1x1x128xf32> to vector<1xf32>
    %262 = vector.shape_cast %261 : vector<1xf32> to vector<1x1x1xf32>
    %263 = vector.extract %262[0, 0, 0] : f32 from vector<1x1x1xf32>
    %cst_63 = arith.constant 7.000000e+00 : f32
    %264 = arith.mulf %cst_63, %257 : f32
    %cst_64 = arith.constant 1.270000e+02 : f32
    %265 = arith.minimumf %264, %cst_64 : f32
    %266 = tpu.iota {dimensions = array<i32: 0>} : vector<128x128xi32>
    %267 = tpu.iota {dimensions = array<i32: 1>} : vector<128x128xi32>
    %268 = vector.shape_cast %251 : vector<1x128xf32> to vector<1x128xf32>
    %269 = vector.broadcast %268 : vector<1x128xf32> to vector<128x128xf32>
    %270 = vector.shape_cast %249 : vector<1x128xf32> to vector<1x128xf32>
    %271 = vector.broadcast %270 : vector<1x128xf32> to vector<128x128xf32>
    %272 = arith.extui %196 : vector<1x128xi1> to vector<1x128xi32>
    %273 = arith.sitofp %272 : vector<1x128xi32> to vector<1x128xf32>
    %274 = vector.shape_cast %273 : vector<1x128xf32> to vector<1x128xf32>
    %275 = vector.broadcast %274 : vector<1x128xf32> to vector<128x128xf32>
    %c0_i32_65 = arith.constant 0 : i32
    %276 = vector.broadcast %c0_i32_65 : i32 to vector<128x128xi32>
    %277 = arith.addi %266, %276 : vector<128x128xi32>
    %278 = arith.cmpi eq, %267, %277 : vector<128x128xi32>
    %cst_66 = arith.constant 0.000000e+00 : f32
    %279 = vector.broadcast %cst_66 : f32 to vector<128x128xf32>
    %280 = arith.select %278, %269, %279 : vector<128x128xi1>, vector<128x128xf32>
    %cst_67 = arith.constant dense<0.000000e+00> : vector<128xf32>
    %281 = vector.multi_reduction <add>, %280, %cst_67 [1] : vector<128x128xf32> to vector<128xf32>
    %282 = vector.shape_cast %281 : vector<128xf32> to vector<128x1xf32>
    %cst_68 = arith.constant 0.000000e+00 : f32
    %283 = vector.broadcast %cst_68 : f32 to vector<128x128xf32>
    %284 = arith.select %278, %271, %283 : vector<128x128xi1>, vector<128x128xf32>
    %cst_69 = arith.constant dense<0.000000e+00> : vector<128xf32>
    %285 = vector.multi_reduction <add>, %284, %cst_69 [1] : vector<128x128xf32> to vector<128xf32>
    %286 = vector.shape_cast %285 : vector<128xf32> to vector<128x1xf32>
    %cst_70 = arith.constant 0.000000e+00 : f32
    %287 = vector.broadcast %cst_70 : f32 to vector<128x128xf32>
    %288 = arith.select %278, %275, %287 : vector<128x128xi1>, vector<128x128xf32>
    %cst_71 = arith.constant dense<0.000000e+00> : vector<128xf32>
    %289 = vector.multi_reduction <add>, %288, %cst_71 [1] : vector<128x128xf32> to vector<128xf32>
    %290 = vector.shape_cast %289 : vector<128xf32> to vector<128x1xf32>
    %cst_72 = arith.constant 0.000000e+00 : f32
    %291 = vector.broadcast %cst_72 : f32 to vector<128x1xf32>
    %292 = arith.cmpf ogt, %290, %291 : vector<128x1xf32>
    %293 = vector.broadcast %282 : vector<128x1xf32> to vector<128x128xf32>
    %294 = arith.cmpf ogt, %269, %293 : vector<128x128xf32>
    %295 = vector.broadcast %282 : vector<128x1xf32> to vector<128x128xf32>
    %296 = arith.cmpf oeq, %269, %295 : vector<128x128xf32>
    %297 = arith.cmpi slt, %267, %277 : vector<128x128xi32>
    %298 = arith.andi %296, %297 : vector<128x128xi1>
    %299 = arith.ori %294, %298 : vector<128x128xi1>
    %300 = arith.extui %299 : vector<128x128xi1> to vector<128x128xi32>
    %301 = arith.sitofp %300 : vector<128x128xi32> to vector<128x128xf32>
    %cst_73 = arith.constant dense<0.000000e+00> : vector<128xf32>
    %302 = vector.multi_reduction <add>, %301, %cst_73 [1] : vector<128x128xf32> to vector<128xf32>
    %303 = vector.shape_cast %302 : vector<128xf32> to vector<128x1xf32>
    %304 = vector.broadcast %265 : f32 to vector<128x1xf32>
    %305 = arith.cmpf olt, %303, %304 : vector<128x1xf32>
    %306 = arith.ori %292, %305 : vector<128x1xi1>
    %cst_74 = arith.constant 0.000000e+00 : f32
    %307 = vector.broadcast %cst_74 : f32 to vector<128x1xf32>
    %308 = arith.select %306, %286, %307 : vector<128x1xi1>, vector<128x1xf32>
    %309 = vector.shape_cast %308 : vector<128x1xf32> to vector<1x128x1xf32>
    %cst_75 = arith.constant dense<0.000000e+00> : vector<1xf32>
    %310 = vector.multi_reduction <add>, %309, %cst_75 [1, 2] : vector<1x128x1xf32> to vector<1xf32>
    %311 = vector.shape_cast %310 : vector<1xf32> to vector<1x1x1xf32>
    %312 = vector.extract %311[0, 0, 0] : f32 from vector<1x1x1xf32>
    %cst_76 = arith.constant 0.000000e+00 : f32
    %313 = arith.addf %cst_76, %312 : f32
    %314 = tpu.iota {dimensions = array<i32: 1>} : vector<1x128xi32>
    %c0_i32_77 = arith.constant 0 : i32
    %315 = vector.broadcast %c0_i32_77 : i32 to vector<1x128xi32>
    %316 = arith.cmpi eq, %314, %315 : vector<1x128xi32>
    %cst_78 = arith.constant 0.000000e+00 : f32
    %317 = vector.broadcast %232 : f32 to vector<1x128xf32>
    %318 = vector.broadcast %cst_78 : f32 to vector<1x128xf32>
    %319 = arith.select %316, %317, %318 : vector<1x128xi1>, vector<1x128xf32>
    %c1_i32_79 = arith.constant 1 : i32
    %320 = vector.broadcast %c1_i32_79 : i32 to vector<1x128xi32>
    %321 = arith.cmpi eq, %314, %320 : vector<1x128xi32>
    %cst_80 = arith.constant 0.000000e+00 : f32
    %322 = vector.broadcast %313 : f32 to vector<1x128xf32>
    %323 = vector.broadcast %cst_80 : f32 to vector<1x128xf32>
    %324 = arith.select %321, %322, %323 : vector<1x128xi1>, vector<1x128xf32>
    %325 = arith.addf %319, %324 : vector<1x128xf32>
    %c2_i32_81 = arith.constant 2 : i32
    %326 = vector.broadcast %c2_i32_81 : i32 to vector<1x128xi32>
    %327 = arith.cmpi eq, %314, %326 : vector<1x128xi32>
    %cst_82 = arith.constant 0.000000e+00 : f32
    %328 = vector.broadcast %214 : f32 to vector<1x128xf32>
    %329 = vector.broadcast %cst_82 : f32 to vector<1x128xf32>
    %330 = arith.select %327, %328, %329 : vector<1x128xi1>, vector<1x128xf32>
    %331 = arith.addf %325, %330 : vector<1x128xf32>
    %c3_i32_83 = arith.constant 3 : i32
    %332 = vector.broadcast %c3_i32_83 : i32 to vector<1x128xi32>
    %333 = arith.cmpi eq, %314, %332 : vector<1x128xi32>
    %cst_84 = arith.constant 0.000000e+00 : f32
    %334 = vector.broadcast %257 : f32 to vector<1x128xf32>
    %335 = vector.broadcast %cst_84 : f32 to vector<1x128xf32>
    %336 = arith.select %333, %334, %335 : vector<1x128xi1>, vector<1x128xf32>
    %337 = arith.addf %331, %336 : vector<1x128xf32>
    %c4_i32_85 = arith.constant 4 : i32
    %338 = vector.broadcast %c4_i32_85 : i32 to vector<1x128xi32>
    %339 = arith.cmpi eq, %314, %338 : vector<1x128xi32>
    %cst_86 = arith.constant 0.000000e+00 : f32
    %340 = vector.broadcast %263 : f32 to vector<1x128xf32>
    %341 = vector.broadcast %cst_86 : f32 to vector<1x128xf32>
    %342 = arith.select %339, %340, %341 : vector<1x128xi1>, vector<1x128xf32>
    %343 = arith.addf %337, %342 : vector<1x128xf32>
    %c0_87 = arith.constant 0 : index
    %c0_88 = arith.constant 0 : index
    %c0_89 = arith.constant 0 : index
    %344 = vector.load %arg7[%c0_87, %c0_88, %c0_89] : memref<1x1x128xf32, #tpu.memory_space<vmem>>, vector<1x1x128xf32>
    %345 = vector.shape_cast %344 : vector<1x1x128xf32> to vector<1x128xf32>
    %346 = vector.shape_cast %343 : vector<1x128xf32> to vector<1x1x128xf32>
    tpu.vector_store %arg7[%c0_87, %c0_88, %c0_89], %346 {strides = array<i32>} : memref<1x1x128xf32, #tpu.memory_space<vmem>>, vector<1x1x128xf32>,
    return
  }
  func.func @transform_0(%arg0: i32) -> (i32, i32, i32) {
    %c0_i32 = arith.constant 0 : i32
    %c0_i32_0 = arith.constant 0 : i32
    %c0_i32_1 = arith.constant 0 : i32
    return %arg0, %c0_i32, %c0_i32_0 : i32, i32, i32
  }
  func.func @transform_1(%arg0: i32) -> (i32, i32, i32) {
    %c0_i32 = arith.constant 0 : i32
    %c0_i32_0 = arith.constant 0 : i32
    %c0_i32_1 = arith.constant 0 : i32
    return %arg0, %c0_i32, %c0_i32_0 : i32, i32, i32
  }
  func.func @transform_2(%arg0: i32) -> (i32, i32) {
    %c0_i32 = arith.constant 0 : i32
    %c0_i32_0 = arith.constant 0 : i32
    %c0_i32_1 = arith.constant 0 : i32
    return %c0_i32, %c0_i32_0 : i32, i32
  }
  func.func @transform_3(%arg0: i32) -> (i32, i32, i32) {
    %c0_i32 = arith.constant 0 : i32
    %c0_i32_0 = arith.constant 0 : i32
    %c0_i32_1 = arith.constant 0 : i32
    return %arg0, %c0_i32, %c0_i32_0 : i32, i32, i32
  }
  func.func @transform_4(%arg0: i32) -> (i32, i32, i32) {
    %c0_i32 = arith.constant 0 : i32
    %c0_i32_0 = arith.constant 0 : i32
    %c0_i32_1 = arith.constant 0 : i32
    return %arg0, %c0_i32, %c0_i32_0 : i32, i32, i32
  }
  func.func @transform_5(%arg0: i32) -> (i32, i32, i32) {
    %c0_i32 = arith.constant 0 : i32
    %c0_i32_0 = arith.constant 0 : i32
    %c0_i32_1 = arith.constant 0 : i32
    return %arg0, %c0_i32, %c0_i32_0 : i32, i32, i32
  }
  func.func @transform_6(%arg0: i32) -> (i32, i32, i32) {
    %c0_i32 = arith.constant 0 : i32
    %c0_i32_0 = arith.constant 0 : i32
    %c0_i32_1 = arith.constant 0 : i32
    return %arg0, %c0_i32, %c0_i32_0 : i32, i32, i32
  }
}

</mosaic_0001>

<llo_original>
// kernel: tpu_custom_call.1
$region0: #{tpu_custom_call.1}
  #allocation0 [shape = 'u32[]', space=smem, size = 0x4, offset = 0x4, fixed_abs, tag = 'smem constant byte address 0x4 - core index']
  #allocation1 [shape = 'u32[144,128]{1,0:T(1,128)}', space=vmem, size = 0x12000, scoped, tag = 'internal scratch']
  %s0 = inlined_call_operand.vmem [shape: f32[2,8,4], index: 0, kind: input, shape index: {}]
  %s1 = inlined_call_operand.vmem [shape: f32[2,16,8], index: 1, kind: input, shape index: {}]
  %s2 = inlined_call_operand.vmem [shape: f32[4,128], index: 2, kind: input, shape index: {}]
  %s3 = inlined_call_operand.vmem [shape: f32[2,4,128], index: 3, kind: input, shape index: {}]
  %s4 = inlined_call_operand.vmem [shape: f32[2,2,128], index: 4, kind: input, shape index: {}]
  %s5 = inlined_call_operand.vmem [shape: f32[2,10,128], index: 5, kind: input, shape index: {}]
  %s6 = inlined_call_operand.hbm [shape: f32[2,1,128], index: 6, kind: output, shape index: {}]
  %s7 = sld [smem:[#allocation0]]
  $region57: #{tpu_custom_call.1} parent=0
    _
  %s9 = ssub.s32 1, %s7
  %s10 = scalar_select 0, %s9, %s7
  $region1: #{tpu_custom_call.1} parent=0
    #allocation2 [shape = 'u8[1024]{0}', space=vmem, size = 0x400, scoped, tag = 'output window, operand 0']
    #allocation3 [shape = 's32[2]{0}', space=sflag, size = 0x8, scoped, tag = 'scoped memory for tpu_custom_call.1']
    %11 = vsyncpa [#allocation3], 0
    %s12 = scalar_lea.sflag [#allocation3], 1
    %13 = vsyncpa %s12, 0
    loop: start=0, step=1, limit=4
    $region2: #{tpu_custom_call.1} parent=1 // loop_pre_header
      _
    $region3: #{tpu_custom_call.1} parent=1 // loop_header
      %s15 = sphi 0, %s19
      %p16 = scmp.ge.s32.totalorder %s15, 4
      %s25 = sphi 0, %s27
      %s28 = sphi 0, %s25
      %s29 = sphi 0, %s28
      %s45 = sphi 0, %s29
      %s51 = sphi 0, %s53
      %s54 = sphi 0, %s51
      %s55 = sphi 0, %s54
      %s71 = sphi 0, %s55
      %s75 = sphi 0, %s75
      %s77 = sphi 0, %s75
      %s78 = sphi 0, %s77
      %s92 = sphi 0, %s78
      %s98 = sphi 0, %s100
      %s101 = sphi 0, %s98
      %s102 = sphi 0, %s101
      %s118 = sphi 0, %s102
      %s124 = sphi 0, %s126
      %s127 = sphi 0, %s124
      %s128 = sphi 0, %s127
      %s144 = sphi 0, %s128
      %s150 = sphi 0, %s152
      %s153 = sphi 0, %s150
      %s154 = sphi 0, %s153
      %s170 = sphi 0, %s154
      %s176 = sphi 0, %s178
      %s179 = sphi 0, %s176
      %s180 = sphi 0, %s179
      %s196 = sphi 0, %s180
    $region4: #{tpu_custom_call.1} parent=1 // loop_header_branch
      %18 = sbr.rel (%p16) target = $region8
    $region5: #{tpu_custom_call.1} parent=1 // loop_body
      %s20 = ssub.s32 %s15, 1
      %s21 = ssub.s32 %s15, 2
      %s22 = sadd.s32 %s15, 1
      %s23 = ssub.s32 %s15, %s22
      %p24 = scmp.eq.s32.totalorder %s23, 0
      %s26 = sadd.s32 %s25, 1
      %s27 = scalar_select %p24, %s25, %s26
      %p30 = pneg %p24
      %p31 = scmp.eq.s32.totalorder %s15, 1
      %p32 = por %p30, %p31
      %p33 = scmp.ne.s32.totalorder %s25, %s28
      %p34 = scmp.eq.s32.totalorder %s15, 0
      %p35 = por %p33, %p34
      %p36 = scmp.ne.s32.totalorder %s25, %s28
      %p37 = scmp.eq.s32.totalorder %s20, 1
      %p38 = por %p36, %p37
      %p39 = scmp.ne.s32.totalorder %s28, %s29
      %p40 = scmp.eq.s32.totalorder %s20, 0
      %p41 = por %p39, %p40
      %p42 = scmp.ne.s32.totalorder %s28, %s29
      %p43 = scmp.eq.s32.totalorder %s21, 1
      %p44 = por %p42, %p43
      %p46 = scmp.ne.s32.totalorder %s29, %s45
      %p47 = scmp.eq.s32.totalorder %s21, 0
      %p48 = por %p46, %p47
      %s49 = ssub.s32 %s15, %s22
      %p50 = scmp.eq.s32.totalorder %s49, 0
      %s52 = sadd.s32 %s51, 1
      %s53 = scalar_select %p50, %s51, %s52
      %p56 = pneg %p50
      %p57 = scmp.eq.s32.totalorder %s15, 1
      %p58 = por %p56, %p57
      %p59 = scmp.ne.s32.totalorder %s51, %s54
      %p60 = scmp.eq.s32.totalorder %s15, 0
      %p61 = por %p59, %p60
      %p62 = scmp.ne.s32.totalorder %s51, %s54
      %p63 = scmp.eq.s32.totalorder %s20, 1
      %p64 = por %p62, %p63
      %p65 = scmp.ne.s32.totalorder %s54, %s55
      %p66 = scmp.eq.s32.totalorder %s20, 0
      %p67 = por %p65, %p66
      %p68 = scmp.ne.s32.totalorder %s54, %s55
      %p69 = scmp.eq.s32.totalorder %s21, 1
      %p70 = por %p68, %p69
      %p72 = scmp.ne.s32.totalorder %s55, %s71
      %p73 = scmp.eq.s32.totalorder %s21, 0
      %p74 = por %p72, %p73
      %s76 = sadd.s32 %s75, 1
      %p79 = scmp.eq.s32.totalorder %s15, 1
      %p80 = scmp.ne.s32.totalorder %s75, %s77
      %p81 = scmp.eq.s32.totalorder %s15, 0
      %p82 = por %p80, %p81
      %p83 = scmp.ne.s32.totalorder %s75, %s77
      %p84 = scmp.eq.s32.totalorder %s20, 1
      %p85 = por %p83, %p84
      %p86 = scmp.ne.s32.totalorder %s77, %s78
      %p87 = scmp.eq.s32.totalorder %s20, 0
      %p88 = por %p86, %p87
      %p89 = scmp.ne.s32.totalorder %s77, %s78
      %p90 = scmp.eq.s32.totalorder %s21, 1
      %p91 = por %p89, %p90
      %p93 = scmp.ne.s32.totalorder %s78, %s92
      %p94 = scmp.eq.s32.totalorder %s21, 0
      %p95 = por %p93, %p94
      %s96 = ssub.s32 %s15, %s22
      %p97 = scmp.eq.s32.totalorder %s96, 0
      %s99 = sadd.s32 %s98, 1
      %s100 = scalar_select %p97, %s98, %s99
      %p103 = pneg %p97
      %p104 = scmp.eq.s32.totalorder %s15, 1
      %p105 = por %p103, %p104
      %p106 = scmp.ne.s32.totalorder %s98, %s101
      %p107 = scmp.eq.s32.totalorder %s15, 0
      %p108 = por %p106, %p107
      %p109 = scmp.ne.s32.totalorder %s98, %s101
      %p110 = scmp.eq.s32.totalorder %s20, 1
      %p111 = por %p109, %p110
      %p112 = scmp.ne.s32.totalorder %s101, %s102
      %p113 = scmp.eq.s32.totalorder %s20, 0
      %p114 = por %p112, %p113
      %p115 = scmp.ne.s32.totalorder %s101, %s102
      %p116 = scmp.eq.s32.totalorder %s21, 1
      %p117 = por %p115, %p116
      %p119 = scmp.ne.s32.totalorder %s102, %s118
      %p120 = scmp.eq.s32.totalorder %s21, 0
      %p121 = por %p119, %p120
      %s122 = ssub.s32 %s15, %s22
      %p123 = scmp.eq.s32.totalorder %s122, 0
      %s125 = sadd.s32 %s124, 1
      %s126 = scalar_select %p123, %s124, %s125
      %p129 = pneg %p123
      %p130 = scmp.eq.s32.totalorder %s15, 1
      %p131 = por %p129, %p130
      %p132 = scmp.ne.s32.totalorder %s124, %s127
      %p133 = scmp.eq.s32.totalorder %s15, 0
      %p134 = por %p132, %p133
      %p135 = scmp.ne.s32.totalorder %s124, %s127
      %p136 = scmp.eq.s32.totalorder %s20, 1
      %p137 = por %p135, %p136
      %p138 = scmp.ne.s32.totalorder %s127, %s128
      %p139 = scmp.eq.s32.totalorder %s20, 0
      %p140 = por %p138, %p139
      %p141 = scmp.ne.s32.totalorder %s127, %s128
      %p142 = scmp.eq.s32.totalorder %s21, 1
      %p143 = por %p141, %p142
      %p145 = scmp.ne.s32.totalorder %s128, %s144
      %p146 = scmp.eq.s32.totalorder %s21, 0
      %p147 = por %p145, %p146
      %s148 = ssub.s32 %s15, %s22
      %p149 = scmp.eq.s32.totalorder %s148, 0
      %s151 = sadd.s32 %s150, 1
      %s152 = scalar_select %p149, %s150, %s151
      %p155 = pneg %p149
      %p156 = scmp.eq.s32.totalorder %s15, 1
      %p157 = por %p155, %p156
      %p158 = scmp.ne.s32.totalorder %s150, %s153
      %p159 = scmp.eq.s32.totalorder %s15, 0
      %p160 = por %p158, %p159
      %p161 = scmp.ne.s32.totalorder %s150, %s153
      %p162 = scmp.eq.s32.totalorder %s20, 1
      %p163 = por %p161, %p162
      %p164 = scmp.ne.s32.totalorder %s153, %s154
      %p165 = scmp.eq.s32.totalorder %s20, 0
      %p166 = por %p164, %p165
      %p167 = scmp.ne.s32.totalorder %s153, %s154
      %p168 = scmp.eq.s32.totalorder %s21, 1
      %p169 = por %p167, %p168
      %p171 = scmp.ne.s32.totalorder %s154, %s170
      %p172 = scmp.eq.s32.totalorder %s21, 0
      %p173 = por %p171, %p172
      %s174 = ssub.s32 %s15, %s22
      %p175 = scmp.eq.s32.totalorder %s174, 0
      %s177 = sadd.s32 %s176, 1
      %s178 = scalar_select %p175, %s176, %s177
      %p181 = pneg %p175
      %p182 = scmp.eq.s32.totalorder %s15, 1
      %p183 = por %p181, %p182
      %p184 = scmp.ne.s32.totalorder %s176, %s179
      %p185 = scmp.eq.s32.totalorder %s15, 0
      %p186 = por %p184, %p185
      %p187 = scmp.ne.s32.totalorder %s176, %s179
      %p188 = scmp.eq.s32.totalorder %s20, 1
      %p189 = por %p187, %p188
      %p190 = scmp.ne.s32.totalorder %s179, %s180
      %p191 = scmp.eq.s32.totalorder %s20, 0
      %p192 = por %p190, %p191
      %p193 = scmp.ne.s32.totalorder %s179, %s180
      %p194 = scmp.eq.s32.totalorder %s21, 1
      %p195 = por %p193, %p194
      %p197 = scmp.ne.s32.totalorder %s180, %s196
      %p198 = scmp.eq.s32.totalorder %s21, 0
      %p199 = por %p197, %p198
      %p200 = scmp.le.s32.totalorder 1, %s15
      %p201 = scmp.lt.s32.totalorder %s15, 3
      %p202 = pnand %p200, %p201
      %p203 = pneg %p202
      // Predicated region
      $region9: #{tpu_custom_call.1} parent=5 // pred_check
        _
      $region10: #{tpu_custom_call.1} parent=5 // pred_check_branch
        %205 = sbr.rel (%p202) target = $region12
      $region11: #{tpu_custom_call.1} parent=5 // pred_region
        %s206 = ssub.s32 %s15, 1
        // Predicated region
        $region13: #{tpu_custom_call.1} parent=11 // pred_check
          %p207 = pneg %p88
        $region14: #{tpu_custom_call.1} parent=11 // pred_check_branch
          %209 = sbr.rel (%p207) target = $region16
        $region15: #{tpu_custom_call.1} parent=11 // pred_region
          _
        $region16: #{tpu_custom_call.1} parent=11 // pred_fallthru
          _
      $region12: #{tpu_custom_call.1} parent=5 // pred_fallthru
        _
      %p210 = scmp.lt.s32.totalorder %s15, 2
      // Predicated region
      $region17: #{tpu_custom_call.1} parent=5 // pred_check
        %p211 = pneg %p210
      $region18: #{tpu_custom_call.1} parent=5 // pred_check_branch
        %213 = sbr.rel (%p211) target = $region20
      $region19: #{tpu_custom_call.1} parent=5 // pred_region
        // Predicated region
        $region21: #{tpu_custom_call.1} parent=19 // pred_check
          %p214 = pneg %p35
        $region22: #{tpu_custom_call.1} parent=19 // pred_check_branch
          %216 = sbr.rel (%p214) target = $region24
        $region23: #{tpu_custom_call.1} parent=19 // pred_region
          %p217 = scmp.lt.s32.totalorder %s15, 1
          %s218 = scalar_select %p217, %s15, 1
          %s219 = smul.addr %s218, 8
          %s220 = scalar_lea.vmem %s0, %s219
        $region24: #{tpu_custom_call.1} parent=19 // pred_fallthru
          _
        // Predicated region
        $region25: #{tpu_custom_call.1} parent=19 // pred_check
          %p221 = pneg %p61
        $region26: #{tpu_custom_call.1} parent=19 // pred_check_branch
          %223 = sbr.rel (%p221) target = $region28
        $region27: #{tpu_custom_call.1} parent=19 // pred_region
          %p224 = scmp.lt.s32.totalorder %s15, 1
          %s225 = scalar_select %p224, %s15, 1
          %s226 = smul.addr %s225, 2
          %s227 = smul.addr %s226, 8
          %s228 = scalar_lea.vmem %s1, %s227
        $region28: #{tpu_custom_call.1} parent=19 // pred_fallthru
          _
        // Predicated region
        $region29: #{tpu_custom_call.1} parent=19 // pred_check
          %p229 = pneg %p108
        $region30: #{tpu_custom_call.1} parent=19 // pred_check_branch
          %231 = sbr.rel (%p229) target = $region32
        $region31: #{tpu_custom_call.1} parent=19 // pred_region
          %p232 = scmp.lt.s32.totalorder %s15, 1
          %s233 = scalar_select %p232, %s15, 1
          %s234 = smul.addr %s233, 4
          %s235 = scalar_lea.vmem %s3, %s234
        $region32: #{tpu_custom_call.1} parent=19 // pred_fallthru
          _
        // Predicated region
        $region33: #{tpu_custom_call.1} parent=19 // pred_check
          %p236 = pneg %p134
        $region34: #{tpu_custom_call.1} parent=19 // pred_check_branch
          %238 = sbr.rel (%p236) target = $region36
        $region35: #{tpu_custom_call.1} parent=19 // pred_region
          %p239 = scmp.lt.s32.totalorder %s15, 1
          %s240 = scalar_select %p239, %s15, 1
          %s241 = smul.addr %s240, 2
          %s242 = scalar_lea.vmem %s4, %s241
        $region36: #{tpu_custom_call.1} parent=19 // pred_fallthru
          _
        // Predicated region
        $region37: #{tpu_custom_call.1} parent=19 // pred_check
          %p243 = pneg %p160
        $region38: #{tpu_custom_call.1} parent=19 // pred_check_branch
          %245 = sbr.rel (%p243) target = $region40
        $region39: #{tpu_custom_call.1} parent=19 // pred_region
          %p246 = scmp.lt.s32.totalorder %s15, 1
          %s247 = scalar_select %p246, %s15, 1
          %s248 = smul.addr %s247, 2
          %s249 = smul.addr %s248, 8
          %s250 = scalar_lea.vmem %s5, %s249
        $region40: #{tpu_custom_call.1} parent=19 // pred_fallthru
          _
      $region20: #{tpu_custom_call.1} parent=5 // pred_fallthru
        _
      %p251 = scmp.le.s32.totalorder 1, %s15
      %p252 = scmp.lt.s32.totalorder %s15, 3
      %p253 = pnand %p251, %p252
      %p254 = pneg %p253
      // Predicated region
      $region41: #{tpu_custom_call.1} parent=5 // pred_check
        _
      $region42: #{tpu_custom_call.1} parent=5 // pred_check_branch
        %256 = sbr.rel (%p253) target = $region44
      $region43: #{tpu_custom_call.1} parent=5 // pred_region
        %s257 = ssub.s32 %s15, 1
        %p258 = scmp.lt.s32.totalorder %s20, 1
        %s259 = scalar_select %p258, %s20, 1
        %s260 = smul.addr %s259, 8
        %s261 = scalar_lea.vmem %s0, %s260
        %p262 = pneg %p41
        %p263 = pneg %p38
        %p264 = scmp.lt.s32.totalorder %s20, 1
        %s265 = scalar_select %p264, %s20, 1
        %s266 = smul.addr %s265, 2
        %s267 = smul.addr %s266, 8
        %s268 = scalar_lea.vmem %s1, %s267
        %p269 = pneg %p67
        %p270 = pneg %p64
        %p271 = pneg %p88
        %p272 = pneg %p85
        %p273 = scmp.lt.s32.totalorder %s20, 1
        %s274 = scalar_select %p273, %s20, 1
        %s275 = smul.addr %s274, 4
        %s276 = scalar_lea.vmem %s3, %s275
        %p277 = pneg %p114
        %p278 = pneg %p111
        %p279 = scmp.lt.s32.totalorder %s20, 1
        %s280 = scalar_select %p279, %s20, 1
        %s281 = smul.addr %s280, 2
        %s282 = scalar_lea.vmem %s4, %s281
        %p283 = pneg %p140
        %p284 = pneg %p137
        %p285 = scmp.lt.s32.totalorder %s20, 1
        %s286 = scalar_select %p285, %s20, 1
        %s287 = smul.addr %s286, 2
        %s288 = smul.addr %s287, 8
        %s289 = scalar_lea.vmem %s5, %s288
        %p290 = pneg %p166
        %p291 = pneg %p163
        %p292 = pneg %p192
        %p293 = pneg %p189
        %s294 = sand.u32 %s179, 1
        %s295 = scalar_lea.sflag [#allocation3], %s294
        %s296 = sand.u32 %s179, 1
        %s297 = scalar_lea.vmem [#allocation2], %s296
        %p298 = scmp.lt.s32.totalorder %s20, 1
        %s299 = scalar_select %p298, %s20, 1
        %s300 = smul.addr %s299, 8
        %s301 = scalar_lea.vmem %s0, %s300
        %p302 = scmp.lt.s32.totalorder %s20, 1
        %s303 = scalar_select %p302, %s20, 1
        %s304 = smul.addr %s303, 2
        %s305 = smul.addr %s304, 8
        %s306 = scalar_lea.vmem %s1, %s305
        %p307 = scmp.lt.s32.totalorder %s20, 1
        %s308 = scalar_select %p307, %s20, 1
        %s309 = smul.addr %s308, 4
        %s310 = scalar_lea.vmem %s3, %s309
        %p311 = scmp.lt.s32.totalorder %s20, 1
        %s312 = scalar_select %p311, %s20, 1
        %s313 = smul.addr %s312, 2
        %s314 = scalar_lea.vmem %s4, %s313
        %p315 = scmp.lt.s32.totalorder %s20, 1
        %s316 = scalar_select %p315, %s20, 1
        %s317 = smul.addr %s316, 2
        %s318 = smul.addr %s317, 8
        %s319 = scalar_lea.vmem %s5, %s318
        %v320 = vld [vmem:[%s301] sm:$0xff]
        %v321 = vld [vmem:[%s306] sm:$0xff]
        %v322 = vld [vmem:[%s306 + $0x8] sm:$0xff]
        %v323 = vld [vmem:[%s2] sm:$0xf]
        %v324 = vld [vmem:[%s310] sm:$0xf]
        %v325 = vld [vmem:[%s314] sm:$0x3]
        %v326 = vld [vmem:[%s319] sm:$0xff]
        %v327 = vld [vmem:[%s319 + $0x8] sm:$0x3]
        %v328 = vmul.f32 %v323, 0.5
        %v330 = vrot.slane %v328, 2
        %v332 = vsub.f32 %v323, %v330
        %v333 = vadd.f32 %v323, %v330
        %335 = vset.pattern.permute.xlu0 2
        %336 = vperm.xlu0 %335, %v320
        %v337 = vpop.permute.xlu0 %336
        %v339 = vlaneseq
        %v340 = vshrl.u32 %v339, 7
        %v341 = vsub.s32 0, %v340
        %v342 = vrot.slane %v333, %v341
        %v343 = vmin.f32 %v337, %v342
        %344 = vset.pattern.permute.xlu0 0
        %345 = vperm.xlu0 %344, %v320
        %v346 = vpop.permute.xlu0 %345
        %v348 = vlaneseq
        %v349 = vshrl.u32 %v348, 7
        %v350 = vsub.s32 0, %v349
        %v351 = vrot.slane %v332, %v350
        %v352 = vmax.f32 %v346, %v351
        %v353 = vsub.f32 %v343, %v352
        %v354 = vmax.f32 %v353, 0.0
        %355 = vset.pattern.permute.xlu0 3
        %356 = vperm.xlu0 %355, %v320
        %v357 = vpop.permute.xlu0 %356
        %v359 = vlaneseq
        %v360 = vshrl.u32 %v359, 7
        %v361 = vsub.s32 1, %v360
        %v362 = vrot.slane %v333, %v361
        %v363 = vmin.f32 %v357, %v362
        %364 = vset.pattern.permute.xlu0 1
        %365 = vperm.xlu0 %364, %v320
        %v366 = vpop.permute.xlu0 %365
        %v368 = vlaneseq
        %v369 = vshrl.u32 %v368, 7
        %v370 = vsub.s32 1, %v369
        %v371 = vrot.slane %v332, %v370
        %v372 = vmax.f32 %v366, %v371
        %v373 = vsub.f32 %v363, %v372
        %v374 = vmax.f32 %v373, 0.0
        %v375 = vmul.f32 %v354, %v374
        %376 = vrot.lane.b32.xlu0 %v320, 2
        %v377 = vpop.permute.xlu0 %376
        %v379 = vsub.f32 %v320, %v377
        %381 = vrot.lane.b32.xlu0 %v379, 127
        %v382 = vpop.permute.xlu0 %381
        %v384 = vmul.f32 %v379, %v382
        %v385 = vsub.f32 %v333, %v332
        %v387 = vrot.slane %v385, 1
        %v389 = vmul.f32 %v385, %v387
        %391 = vset.pattern.permute.xlu0 2
        %392 = vperm.xlu0 %391, %v384
        %v393 = vpop.permute.xlu0 %392
        %v395 = vlaneseq
        %v396 = vshrl.u32 %v395, 7
        %v397 = vsub.s32 0, %v396
        %v398 = vrot.slane %v389, %v397
        %v399 = vadd.f32 %v393, %v398
        %v400 = vsub.f32 %v399, %v375
        %v401 = vrcp.pop %v400
        %v402 = vmul.f32 %v375, %v401
        %v403 = vlaneseq
        %v404 = vshrl.u32 %v403, 7
        %v405 = vlaneseq
        %v406 = vand.u32 %v405, 127
        %407 = vmax.xlane.f32.xlu0 %v402
        %v408 = vpop.xlane.xlu0 %407
        %vm409 = vcmp.eq.f32.partialorder %v402, %v408
        %v410 = vsel %vm409, %v406, 128
        %v411 = vand.u32 %v410, 65535
        %v412 = vshra.s32 %v410, 16
        %v413 = vcvt.s32.f32 %v411
        %v414 = vcvt.s32.f32 %v412
        %415 = vmin.xlane.f32.xlu0 %v414
        %v416 = vpop.xlane.xlu0 %415
        %vm417 = vcmp.eq.f32.partialorder %v414, %v416
        %v418 = vsel %vm417, %v413, inf
        %419 = vmin.xlane.f32.xlu0 %v418
        %v420 = vpop.xlane.xlu0 %419
        %v421 = vcvt.f32.s32 %v420
        %v422 = vcvt.f32.s32 %v416
        %v423 = vshll.u32 %v422, 16
        %v424 = vadd.s32 %v423, %v421
        %v425 = vrot.slane %v402, 4
        %v426 = vmax.f32 %v402, %v425
        %v427 = vrot.slane %v426, 2
        %v428 = vmax.f32 %v426, %v427
        %v429 = vrot.slane %v428, 1
        %v430 = vmax.f32 %v428, %v429
        %vm431 = vcmp.eq.f32.partialorder %v402, %v430
        %v432 = vsel %vm431, %v404, 8
        %v433 = vrot.slane %v432, 4
        %vm434 = vcmp.lt.s32.totalorder %v432, %v433
        %v435 = vsel %vm434, %v432, %v433
        %v436 = vrot.slane %v435, 2
        %vm437 = vcmp.lt.s32.totalorder %v435, %v436
        %v438 = vsel %vm437, %v435, %v436
        %v439 = vrot.slane %v438, 1
        %vm440 = vcmp.lt.s32.totalorder %v438, %v439
        %v441 = vsel %vm440, %v438, %v439
        %vm442 = vcmp.eq.s32.totalorder %v406, %v424
        %v443 = vsel %vm442, 2.0, %v430
        %v444 = vsel %vm442, 0, %v441
        %v446 = vrot.slane %v443, 7
        %v448 = vsel %vm442, 2.0, %v446
        %v449 = vrot.slane %v444, 7
        %v450 = vsel %vm442, 1, %v449
        %v452 = vrot.slane %v448, 7
        %v454 = vsel %vm442, 2.0, %v452
        %v455 = vrot.slane %v450, 7
        %v456 = vsel %vm442, 2, %v455
        %v458 = vrot.slane %v454, 7
        %v460 = vsel %vm442, 2.0, %v458
        %v461 = vrot.slane %v456, 7
        %v462 = vsel %vm442, 3, %v461
        %v464 = vrot.slane %v460, 7
        %v466 = vsel %vm442, 2.0, %v464
        %v467 = vrot.slane %v462, 7
        %v468 = vsel %vm442, 4, %v467
        %v470 = vrot.slane %v466, 7
        %v472 = vsel %vm442, 2.0, %v470
        %v473 = vrot.slane %v468, 7
        %v474 = vsel %vm442, 5, %v473
        %v476 = vrot.slane %v472, 7
        %v478 = vsel %vm442, 2.0, %v476
        %v479 = vrot.slane %v474, 7
        %v480 = vsel %vm442, 6, %v479
        %v482 = vrot.slane %v478, 7
        %v484 = vsel %vm442, 2.0, %v482
        %v485 = vrot.slane %v480, 7
        %v486 = vsel %vm442, 7, %v485
        %v487 = vlaneseq
        %v488 = vshrl.u32 %v487, 7
        %v489 = vsub.s32 7, %v488
        %v490 = vrot.slane %v486, %v489
        %vm491 = vcmp.eq.s32.totalorder %v404, %v490
        %v492 = vsel %vm491, 1, 0
        %v493 = vcvt.s32.f32 %v492
        %vm494 = vcmask 64512
        %v496 = vsel %vm494, %v321, 0
        %v499 = vsel %vm494, %v322, 0
        %501 = vmatprep.subr.mxu0 0.0
        %502 = vmatpush1.msra.mxu0 0.0
        %503 = vmatprep.subr.mxu0 0.0
        %504 = vmatpush1.msra.mxu0 0.0
        %505 = vmatprep.subr.mxu0 0.0
        %506 = vmatpush1.msra.mxu0 0.0
        %507 = vmatprep.subr.mxu0 0.0
        %508 = vmatpush1.msra.mxu0 0.0
        %509 = vmatprep.subr.mxu0 0.0
        %510 = vmatpush1.msra.mxu0 0.0
        %511 = vmatprep.subr.mxu0 0.0
        %512 = vmatpush1.msra.mxu0 0.0
        %513 = vmatprep.subr.mxu0 0.0
        %514 = vmatpush1.msra.mxu0 0.0
        %515 = vmatprep.subr.mxu0 0.0
        %516 = vmatpush1.msra.mxu0 0.0
        %517 = vmatprep.subr.mxu0 0.0
        %518 = vmatpush1.msra.mxu0 0.0
        %519 = vmatprep.subr.mxu0 0.0
        %520 = vmatpush1.msra.mxu0 0.0
        %521 = vmatprep.subr.mxu0 0.0
        %522 = vmatpush1.msra.mxu0 0.0
        %523 = vmatprep.subr.mxu0 0.0
        %524 = vmatpush1.msra.mxu0 0.0
        %525 = vmatprep.subr.mxu0 0.0
        %526 = vmatpush1.msra.mxu0 0.0
        %527 = vmatprep.subr.mxu0 0.0
        %528 = vmatpush1.msra.mxu0 0.0
        %529 = vmatprep.subr.mxu0 0.0
        %530 = vmatpush1.msra.mxu0 0.0
        %531 = vmatprep.subr.mxu0 0.0
        %532 = vmatpush1.msra.mxu0 %v493
        %533 = vmatprep.subr.mxu0 0.0
        %534 = vmatpush2.msra.mxu0 0.0
        %535 = vmatprep.subr.mxu0 0.0
        %536 = vmatpush2.msra.mxu0 0.0
        %537 = vmatprep.subr.mxu0 0.0
        %538 = vmatpush2.msra.mxu0 0.0
        %539 = vmatprep.subr.mxu0 0.0
        %540 = vmatpush2.msra.mxu0 0.0
        %541 = vmatprep.subr.mxu0 0.0
        %542 = vmatpush2.msra.mxu0 0.0
        %543 = vmatprep.subr.mxu0 0.0
        %544 = vmatpush2.msra.mxu0 0.0
        %545 = vmatprep.subr.mxu0 0.0
        %546 = vmatpush2.msra.mxu0 0.0
        %547 = vmatprep.subr.mxu0 0.0
        %548 = vmatpush2.msra.mxu0 0.0
        %549 = vmatprep.subr.mxu0 0.0
        %550 = vmatpush2.msra.mxu0 0.0
        %551 = vmatprep.subr.mxu0 0.0
        %552 = vmatpush2.msra.mxu0 0.0
        %553 = vmatprep.subr.mxu0 0.0
        %554 = vmatpush2.msra.mxu0 0.0
        %555 = vmatprep.subr.mxu0 0.0
        %556 = vmatpush2.msra.mxu0 0.0
        %557 = vmatprep.subr.mxu0 0.0
        %558 = vmatpush2.msra.mxu0 0.0
        %559 = vmatprep.subr.mxu0 0.0
        %560 = vmatpush2.msra.mxu0 0.0
        %561 = vmatprep.subr.mxu0 0.0
        %562 = vmatpush2.msra.mxu0 0.0
        %563 = vmatprep.subr.mxu0 0.0
        %564 = vmatpush2.msra.mxu0 0.0
        %565 = vmatprep.mubr.f32.mxu0 0.0
        %566 = vmatmul.mubr.f32.gmra.mxu0 %v496
        %v567 = vpop.f32.mrf.mxu0
        %v568 = vadd.f32 0.0, %v567
        %v569 = vpop.f32.mrf.mxu0
        %570 = vmatprep.mubr.f32.mxu0 0.0
        %571 = vmatmul.mubr.f32.gmra.mxu0 %v499
        %v572 = vpop.f32.mrf.mxu0
        %v573 = vadd.f32 0.0, %v572
        %v574 = vpop.f32.mrf.mxu0
        %575 = vdwg.mxu0
        %vm576 = vcmp.lt.f32.partialorder %v484, 0.35
        %v578 = vrot.slane %v573, 7
        %v580 = vsel %vm576, 0.0, %v578
        %v581 = vrot.slane %v573, 2
        %v583 = vadd.f32 %v573, %v581
        %v584 = vmul.f32 %v583, 0.5
        %v586 = vrot.slane %v323, 6
        %v588 = vsub.f32 %v584, %v586
        %v589 = vmul.f32 %v323, 0.1
        %v590 = vrcp.pop %v589
        %v591 = vmul.f32 %v588, %v590
        %v592 = vrot.slane %v573, 6
        %v594 = vsub.f32 %v573, %v592
        %v595 = vrcp.pop %v586
        %v596 = vmul.f32 %v594, %v595
        %v597 = vlog2.pop %v596
        %v598 = vmul.f32 %v597, 0.6931472
        %v599 = vrcp.pop 0.2
        %v600 = vmul.f32 %v598, %v599
        %v602 = vrot.slane %v591, 2
        %v605 = vrot.slane %v600, 2
        %vm607 = vcmask 1040384
        %vm608 = vcmask 1041408
        %v609 = vsel %vm608, %v602, %v605
        %vm610 = vcmask 1042432
        %v611 = vsel %vm610, %v609, %v605
        %v612 = vrot.slane %v323, 4
        %v614 = vrot.slane %v323, 2
        %v616 = vsel %vm608, %v323, %v586
        %v617 = vsel %vm610, %v616, %v586
        %vm618 = vcmask 1043456
        %v619 = vsel %vm618, %v617, %v612
        %vm620 = vcmask 1044480
        %v621 = vsel %vm620, %v619, %v612
        %vm622 = vcmask 1045504
        %v623 = vsel %vm622, %v621, %v614
        %vm624 = vcmask 1046528
        %v625 = vsel %vm624, %v623, %v614
        %v627 = vrot.slane %v589, 2
        %v629 = vrot.slane %v589, 6
        %v631 = vrot.slane %v589, 4
        %v633 = vsel %vm608, %v627, %v589
        %v634 = vsel %vm610, %v633, %v589
        %v635 = vsel %vm618, %v634, %v629
        %v636 = vsel %vm620, %v635, %v629
        %v637 = vsel %vm622, %v636, %v631
        %v638 = vsel %vm624, %v637, %v631
        %v639 = vsub.f32 %v568, %v625
        %v640 = vsub.f32 %v573, %v323
        %v641 = vrcp.pop %v638
        %v642 = vmul.f32 %v639, %v641
        %v643 = vrcp.pop %v627
        %v644 = vmul.f32 %v640, %v643
        %vm645 = vcmp.gt.f32.partialorder %v580, 0.0
        %vm646 = vcmp.ne.f32.partialorder %v580, 0.0
        %v647 = vsub.f32 %v326, %v642
        %v648 = vsub.f32 %v327, %v644
        %v649 = vand.u32 2147483647, %v647
        %v650 = vand.u32 2147483647, %v648
        %vm651 = vcmp.lt.f32.partialorder %v649, 1.0
        %vm652 = vcmp.lt.f32.partialorder %v650, 1.0
        %v653 = vmul.f32 %v647, 0.5
        %v654 = vmul.f32 %v648, 0.5
        %v655 = vmul.f32 %v653, %v647
        %v656 = vmul.f32 %v654, %v648
        %v657 = vsub.f32 %v649, 0.5
        %v658 = vsub.f32 %v650, 0.5
        %v659 = vsel %vm651, %v655, %v657
        %v660 = vsel %vm652, %v656, %v658
        %v661 = vsel %vm645, 1, 0
        %v662 = vlaneseq
        %v663 = vshrl.u32 %v662, 7
        %v664 = vsub.s32 7, %v663
        %v665 = vrot.slane %v661, %v664
        %vm666 = vcmp.eq.s32.totalorder %v665, 1
        %v667 = vsel %vm666, %v659, 0.0
        %v668 = vsel %vm666, %v660, 0.0
        %v669 = vsel %vm608, %v668, 0.0
        %v670 = vadd.f32 %v667, %v669
        %671 = vadd.xlane.f32.xlu0 %v670
        %v672 = vpop.xlane.xlu0 %671
        %v673 = vrot.slane %v672, 4
        %v674 = vadd.f32 %v672, %v673
        %v675 = vrot.slane %v674, 2
        %v676 = vadd.f32 %v674, %v675
        %v677 = vrot.slane %v676, 1
        %v678 = vadd.f32 %v676, %v677
        %s679 = vtos %v678
        %v680 = vsub.f32 %v324, %v611
        %v681 = vand.u32 2147483647, %v680
        %vm682 = vcmp.lt.f32.partialorder %v681, 1.0
        %v683 = vmul.f32 %v680, 0.5
        %v684 = vmul.f32 %v683, %v680
        %v685 = vsub.f32 %v681, 0.5
        %v686 = vsel %vm682, %v684, %v685
        %v687 = vsel %vm646, 1, 0
        %v688 = vlaneseq
        %v689 = vshrl.u32 %v688, 7
        %v690 = vsub.s32 7, %v689
        %v691 = vrot.slane %v687, %v690
        %vm692 = vcmp.eq.s32.totalorder %v691, 1
        %v693 = vsel %vm692, %v686, 0.0
        %v694 = vsel %vm618, %v693, 0.0
        %695 = vadd.xlane.f32.xlu0 %v694
        %v696 = vpop.xlane.xlu0 %695
        %v697 = vrot.slane %v696, 4
        %v698 = vadd.f32 %v696, %v697
        %v699 = vrot.slane %v698, 2
        %v700 = vadd.f32 %v698, %v699
        %v701 = vrot.slane %v700, 1
        %v702 = vadd.f32 %v700, %v701
        %s703 = vtos %v702
        %v704 = vsel %vm608, %v325, -inf
        %v705 = vrot.slane %v704, 4
        %v706 = vmax.f32 %v704, %v705
        %v707 = vrot.slane %v706, 2
        %v708 = vmax.f32 %v706, %v707
        %v709 = vrot.slane %v708, 1
        %v710 = vmax.f32 %v708, %v709
        %v711 = vsub.f32 %v325, %v710
        %v712 = vmul.f32 %v711, 1.442695
        %v713 = vpow.pop %v712
        %v714 = vsel %vm608, %v713, 0.0
        %v715 = vrot.slane %v714, 4
        %v716 = vadd.f32 %v714, %v715
        %v717 = vrot.slane %v716, 2
        %v718 = vadd.f32 %v716, %v717
        %v719 = vrot.slane %v718, 1
        %v720 = vadd.f32 %v718, %v719
        %v721 = vlog2.pop %v720
        %v722 = vmul.f32 %v721, 0.6931472
        %v723 = vadd.f32 %v722, %v710
        %v724 = vsel %vm646, 1.0, %v580
        %vm725 = vcmp.eq.f32.partialorder %v724, 1.0
        %v727 = vrot.slane %v325, 2
        %v729 = vrot.slane %v325, 1
        %v731 = vsel %vm725, %v727, %v729
        %v732 = vsub.f32 %v723, %v731
        %v733 = vsel %vm646, 0.0, %v732
        %v734 = vcvt.s32.f32 %v687
        %v736 = vrot.slane %v734, 7
        %v738 = vsel %vm607, %v736, 0.0
        %739 = vadd.xlane.f32.xlu0 %v738
        %v740 = vpop.xlane.xlu0 %739
        %v741 = vrot.slane %v740, 4
        %v742 = vadd.f32 %v740, %v741
        %v743 = vrot.slane %v742, 2
        %v744 = vadd.f32 %v742, %v743
        %v745 = vrot.slane %v744, 1
        %v746 = vadd.f32 %v744, %v745
        %s747 = vtos %v746
        %v748 = vcvt.s32.f32 %v661
        %v750 = vrot.slane %v748, 7
        %v752 = vsel %vm607, %v750, 0.0
        %753 = vadd.xlane.f32.xlu0 %v752
        %v754 = vpop.xlane.xlu0 %753
        %v755 = vrot.slane %v754, 4
        %v756 = vadd.f32 %v754, %v755
        %v757 = vrot.slane %v756, 2
        %v758 = vadd.f32 %v756, %v757
        %v759 = vrot.slane %v758, 1
        %v760 = vadd.f32 %v758, %v759
        %s761 = vtos %v760
        %s762 = smul.f32 %s747, 7.0
        %s763 = smin.f32 %s762, 127.0
        %v764 = vadd.s32 %v404, 8
        %v765 = vadd.s32 %v404, 16
        %v766 = vadd.s32 %v404, 24
        %v767 = vadd.s32 %v404, 32
        %v768 = vadd.s32 %v404, 40
        %v769 = vadd.s32 %v404, 48
        %v770 = vadd.s32 %v404, 56
        %v771 = vadd.s32 %v404, 64
        %v772 = vadd.s32 %v404, 72
        %v773 = vadd.s32 %v404, 80
        %v774 = vadd.s32 %v404, 88
        %v775 = vadd.s32 %v404, 96
        %v776 = vadd.s32 %v404, 104
        %v777 = vadd.s32 %v404, 112
        %v778 = vadd.s32 %v404, 120
        %v779 = vlaneseq
        %v780 = vshrl.u32 %v779, 7
        %v781 = vsub.s32 7, %v780
        %v782 = vrot.slane %v733, %v781
        %v783 = vlaneseq
        %v784 = vshrl.u32 %v783, 7
        %v785 = vsub.s32 7, %v784
        %v786 = vrot.slane %v732, %v785
        %v787 = vlaneseq
        %v788 = vshrl.u32 %v787, 7
        %v789 = vsub.s32 7, %v788
        %v790 = vrot.slane %v734, %v789
        %vm791 = vcmp.eq.s32.totalorder %v406, %v404
        %vm792 = vcmp.eq.s32.totalorder %v406, %v764
        %vm793 = vcmp.eq.s32.totalorder %v406, %v765
        %vm794 = vcmp.eq.s32.totalorder %v406, %v766
        %vm795 = vcmp.eq.s32.totalorder %v406, %v767
        %vm796 = vcmp.eq.s32.totalorder %v406, %v768
        %vm797 = vcmp.eq.s32.totalorder %v406, %v769
        %vm798 = vcmp.eq.s32.totalorder %v406, %v770
        %vm799 = vcmp.eq.s32.totalorder %v406, %v771
        %vm800 = vcmp.eq.s32.totalorder %v406, %v772
        %vm801 = vcmp.eq.s32.totalorder %v406, %v773
        %vm802 = vcmp.eq.s32.totalorder %v406, %v774
        %vm803 = vcmp.eq.s32.totalorder %v406, %v775
        %vm804 = vcmp.eq.s32.totalorder %v406, %v776
        %vm805 = vcmp.eq.s32.totalorder %v406, %v777
        %vm806 = vcmp.eq.s32.totalorder %v406, %v778
        %v807 = vsel %vm791, %v782, 0.0
        %v808 = vsel %vm792, %v782, 0.0
        %v809 = vsel %vm793, %v782, 0.0
        %v810 = vsel %vm794, %v782, 0.0
        %v811 = vsel %vm795, %v782, 0.0
        %v812 = vsel %vm796, %v782, 0.0
        %v813 = vsel %vm797, %v782, 0.0
        %v814 = vsel %vm798, %v782, 0.0
        %v815 = vsel %vm799, %v782, 0.0
        %v816 = vsel %vm800, %v782, 0.0
        %v817 = vsel %vm801, %v782, 0.0
        %v818 = vsel %vm802, %v782, 0.0
        %v819 = vsel %vm803, %v782, 0.0
        %v820 = vsel %vm804, %v782, 0.0
        %v821 = vsel %vm805, %v782, 0.0
        %v822 = vsel %vm806, %v782, 0.0
        %823 = vadd.xlane.f32.xlu0 %v807
        %v824 = vpop.xlane.xlu0 %823
        %825 = vadd.xlane.f32.xlu0 %v808
        %v826 = vpop.xlane.xlu0 %825
        %827 = vadd.xlane.f32.xlu0 %v809
        %v828 = vpop.xlane.xlu0 %827
        %829 = vadd.xlane.f32.xlu0 %v810
        %v830 = vpop.xlane.xlu0 %829
        %831 = vadd.xlane.f32.xlu0 %v811
        %v832 = vpop.xlane.xlu0 %831
        %833 = vadd.xlane.f32.xlu0 %v812
        %v834 = vpop.xlane.xlu0 %833
        %835 = vadd.xlane.f32.xlu0 %v813
        %v836 = vpop.xlane.xlu0 %835
        %837 = vadd.xlane.f32.xlu0 %v814
        %v838 = vpop.xlane.xlu0 %837
        %839 = vadd.xlane.f32.xlu0 %v815
        %v840 = vpop.xlane.xlu0 %839
        %841 = vadd.xlane.f32.xlu0 %v816
        %v842 = vpop.xlane.xlu0 %841
        %843 = vadd.xlane.f32.xlu0 %v817
        %v844 = vpop.xlane.xlu0 %843
        %845 = vadd.xlane.f32.xlu0 %v818
        %v846 = vpop.xlane.xlu0 %845
        %847 = vadd.xlane.f32.xlu0 %v819
        %v848 = vpop.xlane.xlu0 %847
        %849 = vadd.xlane.f32.xlu0 %v820
        %v850 = vpop.xlane.xlu0 %849
        %851 = vadd.xlane.f32.xlu0 %v821
        %v852 = vpop.xlane.xlu0 %851
        %853 = vadd.xlane.f32.xlu0 %v822
        %v854 = vpop.xlane.xlu0 %853
        %v855 = vsel %vm791, %v786, 0.0
        %v856 = vsel %vm792, %v786, 0.0
        %v857 = vsel %vm793, %v786, 0.0
        %v858 = vsel %vm794, %v786, 0.0
        %v859 = vsel %vm795, %v786, 0.0
        %v860 = vsel %vm796, %v786, 0.0
        %v861 = vsel %vm797, %v786, 0.0
        %v862 = vsel %vm798, %v786, 0.0
        %v863 = vsel %vm799, %v786, 0.0
        %v864 = vsel %vm800, %v786, 0.0
        %v865 = vsel %vm801, %v786, 0.0
        %v866 = vsel %vm802, %v786, 0.0
        %v867 = vsel %vm803, %v786, 0.0
        %v868 = vsel %vm804, %v786, 0.0
        %v869 = vsel %vm805, %v786, 0.0
        %v870 = vsel %vm806, %v786, 0.0
        %871 = vadd.xlane.f32.xlu0 %v855
        %v872 = vpop.xlane.xlu0 %871
        %873 = vadd.xlane.f32.xlu0 %v856
        %v874 = vpop.xlane.xlu0 %873
        %875 = vadd.xlane.f32.xlu0 %v857
        %v876 = vpop.xlane.xlu0 %875
        %877 = vadd.xlane.f32.xlu0 %v858
        %v878 = vpop.xlane.xlu0 %877
        %879 = vadd.xlane.f32.xlu0 %v859
        %v880 = vpop.xlane.xlu0 %879
        %881 = vadd.xlane.f32.xlu0 %v860
        %v882 = vpop.xlane.xlu0 %881
        %883 = vadd.xlane.f32.xlu0 %v861
        %v884 = vpop.xlane.xlu0 %883
        %885 = vadd.xlane.f32.xlu0 %v862
        %v886 = vpop.xlane.xlu0 %885
        %887 = vadd.xlane.f32.xlu0 %v863
        %v888 = vpop.xlane.xlu0 %887
        %889 = vadd.xlane.f32.xlu0 %v864
        %v890 = vpop.xlane.xlu0 %889
        %891 = vadd.xlane.f32.xlu0 %v865
        %v892 = vpop.xlane.xlu0 %891
        %893 = vadd.xlane.f32.xlu0 %v866
        %v894 = vpop.xlane.xlu0 %893
        %895 = vadd.xlane.f32.xlu0 %v867
        %v896 = vpop.xlane.xlu0 %895
        %897 = vadd.xlane.f32.xlu0 %v868
        %v898 = vpop.xlane.xlu0 %897
        %899 = vadd.xlane.f32.xlu0 %v869
        %v900 = vpop.xlane.xlu0 %899
        %901 = vadd.xlane.f32.xlu0 %v870
        %v902 = vpop.xlane.xlu0 %901
        %v903 = vsel %vm791, %v790, 0.0
        %v904 = vsel %vm792, %v790, 0.0
        %v905 = vsel %vm793, %v790, 0.0
        %v906 = vsel %vm794, %v790, 0.0
        %v907 = vsel %vm795, %v790, 0.0
        %v908 = vsel %vm796, %v790, 0.0
        %v909 = vsel %vm797, %v790, 0.0
        %v910 = vsel %vm798, %v790, 0.0
        %v911 = vsel %vm799, %v790, 0.0
        %v912 = vsel %vm800, %v790, 0.0
        %v913 = vsel %vm801, %v790, 0.0
        %v914 = vsel %vm802, %v790, 0.0
        %v915 = vsel %vm803, %v790, 0.0
        %v916 = vsel %vm804, %v790, 0.0
        %v917 = vsel %vm805, %v790, 0.0
        %v918 = vsel %vm806, %v790, 0.0
        %919 = vadd.xlane.f32.xlu0 %v903
        %v920 = vpop.xlane.xlu0 %919
        %921 = vadd.xlane.f32.xlu0 %v904
        %v922 = vpop.xlane.xlu0 %921
        %923 = vadd.xlane.f32.xlu0 %v905
        %v924 = vpop.xlane.xlu0 %923
        %925 = vadd.xlane.f32.xlu0 %v906
        %v926 = vpop.xlane.xlu0 %925
        %927 = vadd.xlane.f32.xlu0 %v907
        %v928 = vpop.xlane.xlu0 %927
        %929 = vadd.xlane.f32.xlu0 %v908
        %v930 = vpop.xlane.xlu0 %929
        %931 = vadd.xlane.f32.xlu0 %v909
        %v932 = vpop.xlane.xlu0 %931
        %933 = vadd.xlane.f32.xlu0 %v910
        %v934 = vpop.xlane.xlu0 %933
        %935 = vadd.xlane.f32.xlu0 %v911
        %v936 = vpop.xlane.xlu0 %935
        %937 = vadd.xlane.f32.xlu0 %v912
        %v938 = vpop.xlane.xlu0 %937
        %939 = vadd.xlane.f32.xlu0 %v913
        %v940 = vpop.xlane.xlu0 %939
        %941 = vadd.xlane.f32.xlu0 %v914
        %v942 = vpop.xlane.xlu0 %941
        %943 = vadd.xlane.f32.xlu0 %v915
        %v944 = vpop.xlane.xlu0 %943
        %945 = vadd.xlane.f32.xlu0 %v916
        %v946 = vpop.xlane.xlu0 %945
        %947 = vadd.xlane.f32.xlu0 %v917
        %v948 = vpop.xlane.xlu0 %947
        %949 = vadd.xlane.f32.xlu0 %v918
        %v950 = vpop.xlane.xlu0 %949
        %vm951 = vcmp.gt.f32.partialorder %v920, 0.0
        %vm952 = vcmp.gt.f32.partialorder %v922, 0.0
        %vm953 = vcmp.gt.f32.partialorder %v924, 0.0
        %vm954 = vcmp.gt.f32.partialorder %v926, 0.0
        %vm955 = vcmp.gt.f32.partialorder %v928, 0.0
        %vm956 = vcmp.gt.f32.partialorder %v930, 0.0
        %vm957 = vcmp.gt.f32.partialorder %v932, 0.0
        %vm958 = vcmp.gt.f32.partialorder %v934, 0.0
        %vm959 = vcmp.gt.f32.partialorder %v936, 0.0
        %vm960 = vcmp.gt.f32.partialorder %v938, 0.0
        %vm961 = vcmp.gt.f32.partialorder %v940, 0.0
        %vm962 = vcmp.gt.f32.partialorder %v942, 0.0
        %vm963 = vcmp.gt.f32.partialorder %v944, 0.0
        %vm964 = vcmp.gt.f32.partialorder %v946, 0.0
        %vm965 = vcmp.gt.f32.partialorder %v948, 0.0
        %vm966 = vcmp.gt.f32.partialorder %v950, 0.0
        %vm967 = vcmp.gt.f32.partialorder %v782, %v824
        %vm968 = vcmp.gt.f32.partialorder %v782, %v826
        %vm969 = vcmp.gt.f32.partialorder %v782, %v828
        %vm970 = vcmp.gt.f32.partialorder %v782, %v830
        %vm971 = vcmp.gt.f32.partialorder %v782, %v832
        %vm972 = vcmp.gt.f32.partialorder %v782, %v834
        %vm973 = vcmp.gt.f32.partialorder %v782, %v836
        %vm974 = vcmp.gt.f32.partialorder %v782, %v838
        %vm975 = vcmp.gt.f32.partialorder %v782, %v840
        %vm976 = vcmp.gt.f32.partialorder %v782, %v842
        %vm977 = vcmp.gt.f32.partialorder %v782, %v844
        %vm978 = vcmp.gt.f32.partialorder %v782, %v846
        %vm979 = vcmp.gt.f32.partialorder %v782, %v848
        %vm980 = vcmp.gt.f32.partialorder %v782, %v850
        %vm981 = vcmp.gt.f32.partialorder %v782, %v852
        %vm982 = vcmp.gt.f32.partialorder %v782, %v854
        %vm983 = vcmp.eq.f32.partialorder %v782, %v824
        %vm984 = vcmp.eq.f32.partialorder %v782, %v826
        %vm985 = vcmp.eq.f32.partialorder %v782, %v828
        %vm986 = vcmp.eq.f32.partialorder %v782, %v830
        %vm987 = vcmp.eq.f32.partialorder %v782, %v832
        %vm988 = vcmp.eq.f32.partialorder %v782, %v834
        %vm989 = vcmp.eq.f32.partialorder %v782, %v836
        %vm990 = vcmp.eq.f32.partialorder %v782, %v838
        %vm991 = vcmp.eq.f32.partialorder %v782, %v840
        %vm992 = vcmp.eq.f32.partialorder %v782, %v842
        %vm993 = vcmp.eq.f32.partialorder %v782, %v844
        %vm994 = vcmp.eq.f32.partialorder %v782, %v846
        %vm995 = vcmp.eq.f32.partialorder %v782, %v848
        %vm996 = vcmp.eq.f32.partialorder %v782, %v850
        %vm997 = vcmp.eq.f32.partialorder %v782, %v852
        %vm998 = vcmp.eq.f32.partialorder %v782, %v854
        %vm999 = vcmp.lt.s32.totalorder %v406, %v404
        %vm1000 = vcmp.lt.s32.totalorder %v406, %v764
        %vm1001 = vcmp.lt.s32.totalorder %v406, %v765
        %vm1002 = vcmp.lt.s32.totalorder %v406, %v766
        %vm1003 = vcmp.lt.s32.totalorder %v406, %v767
        %vm1004 = vcmp.lt.s32.totalorder %v406, %v768
        %vm1005 = vcmp.lt.s32.totalorder %v406, %v769
        %vm1006 = vcmp.lt.s32.totalorder %v406, %v770
        %vm1007 = vcmp.lt.s32.totalorder %v406, %v771
        %vm1008 = vcmp.lt.s32.totalorder %v406, %v772
        %vm1009 = vcmp.lt.s32.totalorder %v406, %v773
        %vm1010 = vcmp.lt.s32.totalorder %v406, %v774
        %vm1011 = vcmp.lt.s32.totalorder %v406, %v775
        %vm1012 = vcmp.lt.s32.totalorder %v406, %v776
        %vm1013 = vcmp.lt.s32.totalorder %v406, %v777
        %vm1014 = vcmp.lt.s32.totalorder %v406, %v778
        %vm1015 = vmand %vm983, %vm999
        %vm1016 = vmand %vm984, %vm1000
        %vm1017 = vmand %vm985, %vm1001
        %vm1018 = vmand %vm986, %vm1002
        %vm1019 = vmand %vm987, %vm1003
        %vm1020 = vmand %vm988, %vm1004
        %vm1021 = vmand %vm989, %vm1005
        %vm1022 = vmand %vm990, %vm1006
        %vm1023 = vmand %vm991, %vm1007
        %vm1024 = vmand %vm992, %vm1008
        %vm1025 = vmand %vm993, %vm1009
        %vm1026 = vmand %vm994, %vm1010
        %vm1027 = vmand %vm995, %vm1011
        %vm1028 = vmand %vm996, %vm1012
        %vm1029 = vmand %vm997, %vm1013
        %vm1030 = vmand %vm998, %vm1014
        %vm1031 = vmor %vm967, %vm1015
        %vm1032 = vmor %vm968, %vm1016
        %vm1033 = vmor %vm969, %vm1017
        %vm1034 = vmor %vm970, %vm1018
        %vm1035 = vmor %vm971, %vm1019
        %vm1036 = vmor %vm972, %vm1020
        %vm1037 = vmor %vm973, %vm1021
        %vm1038 = vmor %vm974, %vm1022
        %vm1039 = vmor %vm975, %vm1023
        %vm1040 = vmor %vm976, %vm1024
        %vm1041 = vmor %vm977, %vm1025
        %vm1042 = vmor %vm978, %vm1026
        %vm1043 = vmor %vm979, %vm1027
        %vm1044 = vmor %vm980, %vm1028
        %vm1045 = vmor %vm981, %vm1029
        %vm1046 = vmor %vm982, %vm1030
        %v1047 = vsel %vm1031, 1, 0
        %v1048 = vsel %vm1032, 1, 0
        %v1049 = vsel %vm1033, 1, 0
        %v1050 = vsel %vm1034, 1, 0
        %v1051 = vsel %vm1035, 1, 0
        %v1052 = vsel %vm1036, 1, 0
        %v1053 = vsel %vm1037, 1, 0
        %v1054 = vsel %vm1038, 1, 0
        %v1055 = vsel %vm1039, 1, 0
        %v1056 = vsel %vm1040, 1, 0
        %v1057 = vsel %vm1041, 1, 0
        %v1058 = vsel %vm1042, 1, 0
        %v1059 = vsel %vm1043, 1, 0
        %v1060 = vsel %vm1044, 1, 0
        %v1061 = vsel %vm1045, 1, 0
        %v1062 = vsel %vm1046, 1, 0
        %v1063 = vcvt.s32.f32 %v1047
        %v1064 = vcvt.s32.f32 %v1048
        %v1065 = vcvt.s32.f32 %v1049
        %v1066 = vcvt.s32.f32 %v1050
        %v1067 = vcvt.s32.f32 %v1051
        %v1068 = vcvt.s32.f32 %v1052
        %v1069 = vcvt.s32.f32 %v1053
        %v1070 = vcvt.s32.f32 %v1054
        %v1071 = vcvt.s32.f32 %v1055
        %v1072 = vcvt.s32.f32 %v1056
        %v1073 = vcvt.s32.f32 %v1057
        %v1074 = vcvt.s32.f32 %v1058
        %v1075 = vcvt.s32.f32 %v1059
        %v1076 = vcvt.s32.f32 %v1060
        %v1077 = vcvt.s32.f32 %v1061
        %v1078 = vcvt.s32.f32 %v1062
        %1079 = vadd.xlane.f32.xlu0 %v1063
        %v1080 = vpop.xlane.xlu0 %1079
        %1081 = vadd.xlane.f32.xlu0 %v1064
        %v1082 = vpop.xlane.xlu0 %1081
        %1083 = vadd.xlane.f32.xlu0 %v1065
        %v1084 = vpop.xlane.xlu0 %1083
        %1085 = vadd.xlane.f32.xlu0 %v1066
        %v1086 = vpop.xlane.xlu0 %1085
        %1087 = vadd.xlane.f32.xlu0 %v1067
        %v1088 = vpop.xlane.xlu0 %1087
        %1089 = vadd.xlane.f32.xlu0 %v1068
        %v1090 = vpop.xlane.xlu0 %1089
        %1091 = vadd.xlane.f32.xlu0 %v1069
        %v1092 = vpop.xlane.xlu0 %1091
        %1093 = vadd.xlane.f32.xlu0 %v1070
        %v1094 = vpop.xlane.xlu0 %1093
        %1095 = vadd.xlane.f32.xlu0 %v1071
        %v1096 = vpop.xlane.xlu0 %1095
        %1097 = vadd.xlane.f32.xlu0 %v1072
        %v1098 = vpop.xlane.xlu0 %1097
        %1099 = vadd.xlane.f32.xlu0 %v1073
        %v1100 = vpop.xlane.xlu0 %1099
        %1101 = vadd.xlane.f32.xlu0 %v1074
        %v1102 = vpop.xlane.xlu0 %1101
        %1103 = vadd.xlane.f32.xlu0 %v1075
        %v1104 = vpop.xlane.xlu0 %1103
        %1105 = vadd.xlane.f32.xlu0 %v1076
        %v1106 = vpop.xlane.xlu0 %1105
        %1107 = vadd.xlane.f32.xlu0 %v1077
        %v1108 = vpop.xlane.xlu0 %1107
        %1109 = vadd.xlane.f32.xlu0 %v1078
        %v1110 = vpop.xlane.xlu0 %1109
        %v1111 = vstv %s763
        %vm1112 = vcmp.lt.f32.partialorder %v1080, %v1111
        %vm1113 = vcmp.lt.f32.partialorder %v1082, %v1111
        %vm1114 = vcmp.lt.f32.partialorder %v1084, %v1111
        %vm1115 = vcmp.lt.f32.partialorder %v1086, %v1111
        %vm1116 = vcmp.lt.f32.partialorder %v1088, %v1111
        %vm1117 = vcmp.lt.f32.partialorder %v1090, %v1111
        %vm1118 = vcmp.lt.f32.partialorder %v1092, %v1111
        %vm1119 = vcmp.lt.f32.partialorder %v1094, %v1111
        %vm1120 = vcmp.lt.f32.partialorder %v1096, %v1111
        %vm1121 = vcmp.lt.f32.partialorder %v1098, %v1111
        %vm1122 = vcmp.lt.f32.partialorder %v1100, %v1111
        %vm1123 = vcmp.lt.f32.partialorder %v1102, %v1111
        %vm1124 = vcmp.lt.f32.partialorder %v1104, %v1111
        %vm1125 = vcmp.lt.f32.partialorder %v1106, %v1111
        %vm1126 = vcmp.lt.f32.partialorder %v1108, %v1111
        %vm1127 = vcmp.lt.f32.partialorder %v1110, %v1111
        %vm1128 = vmor %vm951, %vm1112
        %vm1129 = vmor %vm952, %vm1113
        %vm1130 = vmor %vm953, %vm1114
        %vm1131 = vmor %vm954, %vm1115
        %vm1132 = vmor %vm955, %vm1116
        %vm1133 = vmor %vm956, %vm1117
        %vm1134 = vmor %vm957, %vm1118
        %vm1135 = vmor %vm958, %vm1119
        %vm1136 = vmor %vm959, %vm1120
        %vm1137 = vmor %vm960, %vm1121
        %vm1138 = vmor %vm961, %vm1122
        %vm1139 = vmor %vm962, %vm1123
        %vm1140 = vmor %vm963, %vm1124
        %vm1141 = vmor %vm964, %vm1125
        %vm1142 = vmor %vm965, %vm1126
        %vm1143 = vmor %vm966, %vm1127
        %v1144 = vsel %vm1128, %v872, 0.0
        %v1145 = vsel %vm1129, %v874, 0.0
        %v1146 = vsel %vm1130, %v876, 0.0
        %v1147 = vsel %vm1131, %v878, 0.0
        %v1148 = vsel %vm1132, %v880, 0.0
        %v1149 = vsel %vm1133, %v882, 0.0
        %v1150 = vsel %vm1134, %v884, 0.0
        %v1151 = vsel %vm1135, %v886, 0.0
        %v1152 = vsel %vm1136, %v888, 0.0
        %v1153 = vsel %vm1137, %v890, 0.0
        %v1154 = vsel %vm1138, %v892, 0.0
        %v1155 = vsel %vm1139, %v894, 0.0
        %v1156 = vsel %vm1140, %v896, 0.0
        %v1157 = vsel %vm1141, %v898, 0.0
        %v1158 = vsel %vm1142, %v900, 0.0
        %v1159 = vsel %vm1143, %v902, 0.0
        %vm1160 = vcmask 7168
        %v1161 = vsel %vm1160, %v1144, 0.0
        %v1162 = vsel %vm1160, %v1145, 0.0
        %v1163 = vadd.f32 %v1161, %v1162
        %v1164 = vsel %vm1160, %v1146, 0.0
        %v1165 = vadd.f32 %v1163, %v1164
        %v1166 = vsel %vm1160, %v1147, 0.0
        %v1167 = vadd.f32 %v1165, %v1166
        %v1168 = vsel %vm1160, %v1148, 0.0
        %v1169 = vadd.f32 %v1167, %v1168
        %v1170 = vsel %vm1160, %v1149, 0.0
        %v1171 = vadd.f32 %v1169, %v1170
        %v1172 = vsel %vm1160, %v1150, 0.0
        %v1173 = vadd.f32 %v1171, %v1172
        %v1174 = vsel %vm1160, %v1151, 0.0
        %v1175 = vadd.f32 %v1173, %v1174
        %v1176 = vsel %vm1160, %v1152, 0.0
        %v1177 = vadd.f32 %v1175, %v1176
        %v1178 = vsel %vm1160, %v1153, 0.0
        %v1179 = vadd.f32 %v1177, %v1178
        %v1180 = vsel %vm1160, %v1154, 0.0
        %v1181 = vadd.f32 %v1179, %v1180
        %v1182 = vsel %vm1160, %v1155, 0.0
        %v1183 = vadd.f32 %v1181, %v1182
        %v1184 = vsel %vm1160, %v1156, 0.0
        %v1185 = vadd.f32 %v1183, %v1184
        %v1186 = vsel %vm1160, %v1157, 0.0
        %v1187 = vadd.f32 %v1185, %v1186
        %v1188 = vsel %vm1160, %v1158, 0.0
        %v1189 = vadd.f32 %v1187, %v1188
        %v1190 = vsel %vm1160, %v1159, 0.0
        %v1191 = vadd.f32 %v1189, %v1190
        %1192 = vadd.xlane.f32.xlu0 %v1191
        %v1193 = vpop.xlane.xlu0 %1192
        %v1194 = vrot.slane %v1193, 4
        %v1195 = vadd.f32 %v1193, %v1194
        %v1196 = vrot.slane %v1195, 2
        %v1197 = vadd.f32 %v1195, %v1196
        %v1198 = vrot.slane %v1197, 1
        %v1199 = vadd.f32 %v1197, %v1198
        %s1200 = vtos %v1199
        %s1201 = sadd.f32 %s1200, 0.0
        %vm1202 = vcmp.eq.s32.totalorder %v406, 0
        %v1203 = vstv %s703
        %v1204 = vsel %vm1202, %v1203, 0.0
        %vm1205 = vcmp.eq.s32.totalorder %v406, 1
        %v1206 = vstv %s1201
        %v1207 = vsel %vm1205, %v1206, 0.0
        %v1208 = vadd.f32 %v1204, %v1207
        %vm1209 = vcmp.eq.s32.totalorder %v406, 2
        %v1210 = vstv %s679
        %v1211 = vsel %vm1209, %v1210, 0.0
        %v1212 = vadd.f32 %v1208, %v1211
        %vm1213 = vcmp.eq.s32.totalorder %v406, 3
        %v1214 = vstv %s747
        %v1215 = vsel %vm1213, %v1214, 0.0
        %v1216 = vadd.f32 %v1212, %v1215
        %vm1217 = vcmp.eq.s32.totalorder %v406, 4
        %v1218 = vstv %s761
        %v1219 = vsel %vm1217, %v1218, 0.0
        %v1220 = vadd.f32 %v1216, %v1219
        %1221 = vst [vmem:[%s297] sm:$0x1] %v1220
        %s1222 = sand.u32 %s179, 1
        %s1223 = scalar_lea.sflag [#allocation3], %s1222
        %s1224 = sand.u32 %s179, 1
        %s1225 = scalar_lea.vmem [#allocation2], %s1224
        // Predicated region
        $region45: #{tpu_custom_call.1} parent=43 // pred_check
          %p1226 = pneg %p189
        $region46: #{tpu_custom_call.1} parent=43 // pred_check_branch
          %1228 = sbr.rel (%p1226) target = $region48
        $region47: #{tpu_custom_call.1} parent=43 // pred_region
          %s1230 = ssub.s32 16, 16
          %1231 = vsyncadd %s1223, %s1230
          %s1232 = smul.addr %s20, 16
          %s1233 = scalar_lea.hbm %s6, %s1232
          %s1235 = sshll.u32 %s1225, 4
          %s1236 = int_to_ptr.vmem [resolvable:$true] %s1235
          %1238 = dma.vmem_to_hbm [thread:$0]  %s1236, 16, %s1233, %s1223
        $region48: #{tpu_custom_call.1} parent=43 // pred_fallthru
          _
      $region44: #{tpu_custom_call.1} parent=5 // pred_fallthru
        _
      %p1239 = scmp.le.s32.totalorder 2, %s15
      // Predicated region
      $region49: #{tpu_custom_call.1} parent=5 // pred_check
        %p1240 = pneg %p1239
      $region50: #{tpu_custom_call.1} parent=5 // pred_check_branch
        %1242 = sbr.rel (%p1240) target = $region52
      $region51: #{tpu_custom_call.1} parent=5 // pred_region
        %s1243 = ssub.s32 %s15, 2
        // Predicated region
        $region53: #{tpu_custom_call.1} parent=51 // pred_check
          %p1244 = pneg %p195
        $region54: #{tpu_custom_call.1} parent=51 // pred_check_branch
          %1246 = sbr.rel (%p1244) target = $region56
        $region55: #{tpu_custom_call.1} parent=51 // pred_region
          %s1247 = sand.u32 %s180, 1
          %s1248 = scalar_lea.sflag [#allocation3], %s1247
          %s1249 = sand.u32 %s180, 1
          %s1250 = scalar_lea.vmem [#allocation2], %s1249
          %1251 = dma.done %s1248, 16
        $region56: #{tpu_custom_call.1} parent=51 // pred_fallthru
          _
      $region52: #{tpu_custom_call.1} parent=5 // pred_fallthru
        _
    $region6: #{tpu_custom_call.1} parent=1 // loop_footer
      %s19 = sadd.s32 1, %s15
    $region7: #{tpu_custom_call.1} parent=1 // loop_footer_branch
      %14 = sbr.rel target = $region3
    $region8: #{tpu_custom_call.1} parent=1 // loop_exit
      _
    %1252 = vsyncpa [#allocation3], 1
    %s1253 = scalar_lea.sflag [#allocation3], 1
    %1254 = vsyncpa %s1253, 1

</llo_original>
